<compile_context>
chip_gen: v5e
topology: v5e:2x2
jax: 0.10.0
libtpu: 0.0.40
codegen_flags: <defaults>
</compile_context>

<pallas_src>
import math
import functools

import jax
import jax.numpy as jnp
from jax import lax
from jax.experimental import pallas as pl
from jax.experimental.pallas import tpu as pltpu


def mha_kernel(kx_ref, qx_ref, vx_ref,
               wqkv_ref, bqkv_ref, wo_ref, bo_ref,
               out_ref, attn_ref,
               k_scr, v_scr,
               *, num_heads, head_dim):
    """Grid = (batch, q_tile).  Per step: Q projection for one q-tile, per-head
    scaled-dot-product attention against head-major K/V held in VMEM scratch
    (projected once per batch element), output projection."""
    H, D = num_heads, head_dim
    scale = jnp.float32(1.0 / math.sqrt(D))
    t = pl.program_id(1)  # q-tile index (innermost grid axis)

    # ---- K/V projections: once per batch element, full-depth (S,E)@(E,E)
    #      MXU matmuls; result stored head-major so heads are indexed on the
    #      leading axis and later q-tiles reuse it without recompute.
    @pl.when(t == 0)
    def _():
        kf = jnp.dot(kx_ref[...], wqkv_ref[0],
                     preferred_element_type=jnp.float32) + bqkv_ref[0]
        vf = jnp.dot(vx_ref[...], wqkv_ref[2],
                     preferred_element_type=jnp.float32) + bqkv_ref[2]
        kb = kf.astype(jnp.bfloat16)
        vb = vf.astype(jnp.bfloat16)
        # One head-major relayout per batch element (amortized over q-tiles).
        for h in range(H):
            k_scr[h] = kb[:, h * D:(h + 1) * D]
            v_scr[h] = vb[:, h * D:(h + 1) * D]

    # ---- Q projection for this q-tile: full-depth (TQ,E)@(E,E); fold the
    #      1/sqrt(D) scale into Q once (cheaper than scaling (TQ,S) per head).
    qf = jnp.dot(qx_ref[...], wqkv_ref[1],
                 preferred_element_type=jnp.float32) + bqkv_ref[1]
    qb = (qf * scale).astype(jnp.bfloat16)           # (TQ, E)

    ctx_parts = []
    for h in range(H):
        qh = qb[:, h * D:(h + 1) * D]                # (TQ, D) bf16; lane slice
        kh = k_scr[h]                                # (S, D)  head-major scratch
        vh = v_scr[h]

        # energy_h = (Q_h / sqrt(D)) @ K_h^T  -> (TQ, S), f32 accumulation.
        e = lax.dot_general(qh, kh, (((1,), (1,)), ((), ())),
                            preferred_element_type=jnp.float32)

        # Numerically stable softmax in f32; EUP approx reciprocal (error
        # ~2^-12, below the bf16 resolution of the stored attention weights).
        m = jnp.max(e, axis=-1, keepdims=True)
        p = jnp.exp(e - m)
        inv = pl.reciprocal(jnp.sum(p, axis=-1, keepdims=True), approx=True)
        ab = (p * inv).astype(jnp.bfloat16)          # (TQ, S) bf16

        attn_ref[h] = ab                             # heads on leading axis
        ctx_parts.append(jnp.dot(ab, vh, preferred_element_type=jnp.float32)
                         .astype(jnp.bfloat16))      # (TQ, D)

    # Merge heads with a single lane-concatenate so the output projection stays
    # ONE full-depth (TQ,E)@(E,E) matmul.  (Splitting wo per head would drop the
    # contraction depth to D, i.e. 4x MXU under-fill on v6e/v7x, which costs
    # more than this concatenate, which hides in the VPU/XLU slots.)
    ctx = jnp.concatenate(ctx_parts, axis=-1)        # (TQ, E) bf16
    out_ref[...] = (jnp.dot(ctx, wo_ref[...], preferred_element_type=jnp.float32)
                    + bo_ref[...])
    # TODO(synk): nn.Dropout is identity at inference; training-mode dropout
    # (pltpu.prng_seed + prng_random_bits mask) not implemented here.


def _pick_q_tile(seq_len):
    """Largest q-tile that evenly divides S (bounds the (TQ,S) intermediates and
    gives the auto-pipeline several steps); falls back to the whole sequence."""
    if seq_len <= 256:
        return seq_len
    for tq in (512, 256, 128):
        if seq_len % tq == 0:
            return tq
    return seq_len


def _vmem_limit_bytes(S, E, H, D, TQ):
    """Rough per-step VMEM requirement (double-buffered blocks + scratch)."""
    bf, f4 = 2, 4
    est = (2 * 2 * S * E * bf                 # kx, vx input blocks
           + 2 * TQ * E * bf                  # qx input block
           + 2 * (3 * E * E + E * E) * bf     # wqkv + wo weight blocks
           + 2 * (3 * E + E) * f4             # biases
           + 2 * TQ * E * f4                  # out block
           + 2 * H * TQ * S * bf              # attn block (bf16)
           + 2 * H * S * max(D, 128) * bf)    # K/V scratch (lane-padded to 128)
    # Leave headroom; never request v7x's entire 64 MiB of physical VMEM.
    return int(max(32 << 20, min(int(est * 1.5), 48 << 20)))


def multi_head_attention(key, query, value, kernel_params, *, num_heads):
    """kernel_params = (wqkv bf16 (3,E,E), bqkv f32 (3,1,E), wo bf16 (E,E), bo f32 (1,E))."""
    B, S, E = key.shape
    head_dim = E // num_heads
    wqkv, bqkv, wo, bo = kernel_params

    TQ = _pick_q_tile(S)
    n_q = S // TQ

    # Feed activations as bf16: halves HBM->VMEM DMA; all matmuls consume bf16.
    kx = key.astype(jnp.bfloat16)
    qx = query.astype(jnp.bfloat16)
    vx = value.astype(jnp.bfloat16)

    kernel = functools.partial(mha_kernel, num_heads=num_heads, head_dim=head_dim)

    # Batch dim squeezed out of the kernel-visible refs.  K/V blocks depend only
    # on the batch index -> re-DMA'd only when b changes.
    kv_spec = pl.BlockSpec((None, S, E), lambda b, t: (b, 0, 0))
    q_spec = pl.BlockSpec((None, TQ, E), lambda b, t: (b, t, 0))
    # TODO(synk): weight index maps are constant; pipeline_mode=pl.Buffered(1)
    # would single-buffer them and free ~E^2 bytes of VMEM on v7x.
    wqkv_spec = pl.BlockSpec((3, E, E), lambda b, t: (0, 0, 0))
    bqkv_spec = pl.BlockSpec((3, 1, E), lambda b, t: (0, 0, 0))
    wo_spec = pl.BlockSpec((E, E), lambda b, t: (0, 0))
    bo_spec = pl.BlockSpec((1, E), lambda b, t: (0, 0))

    out, attn = pl.pallas_call(
        kernel,
        out_shape=(
            jax.ShapeDtypeStruct((B, S, E), jnp.float32),
            # bf16 attention weights: (B,H,S,S) is the dominant HBM write.
            jax.ShapeDtypeStruct((B, num_heads, S, S), jnp.bfloat16),
        ),
        grid_spec=pltpu.PrefetchScalarGridSpec(
            num_scalar_prefetch=0,
            grid=(B, n_q),
            in_specs=[kv_spec, q_spec, kv_spec,
                      wqkv_spec, bqkv_spec, wo_spec, bo_spec],
            out_specs=[
                pl.BlockSpec((None, TQ, E), lambda b, t: (b, t, 0)),
                pl.BlockSpec((None, num_heads, TQ, S), lambda b, t: (b, 0, t, 0)),
            ],
            scratch_shapes=[
                pltpu.VMEM((num_heads, S, head_dim), jnp.bfloat16),  # K head-major
                pltpu.VMEM((num_heads, S, head_dim), jnp.bfloat16),  # V head-major
            ],
        ),
        compiler_params=pltpu.CompilerParams(
            # Batch axis shards across TensorCores (v7x megacore); q-tile axis is
            # "arbitrary" because the K/V scratch is carried across q-tiles.
            dimension_semantics=("parallel", "arbitrary"),
            vmem_limit_bytes=_vmem_limit_bytes(S, E, num_heads, head_dim, TQ),
        ),
    )(kx, qx, vx, wqkv, bqkv, wo, bo)
    return out, attn


def prepare_params(params_f32):
    """Stack QKV weights/biases and store weights in bf16 for the kernel."""
    wk, bk, wq, bq, wv, bv, wo, bo = params_f32
    wqkv = jnp.stack([wk, wq, wv]).astype(jnp.bfloat16)   # (3, E, E) bf16
    bqkv = jnp.stack([bk, bq, bv])                        # (3, 1, E) f32
    return wqkv, bqkv, wo.astype(jnp.bfloat16), bo


def reference_mha(key, query, value, params, *, num_heads):
    """Pure-JAX f32 reference mirroring the PyTorch forward exactly."""
    wk, bk, wq, bq, wv, bv, wo, bo = params
    B, S, E = key.shape
    D = E // num_heads
    k = key @ wk + bk
    q = query @ wq + bq
    v = value @ wv + bv
    k = k.reshape(B, S, num_heads, D).transpose(0, 2, 1, 3)
    q = q.reshape(B, S, num_heads, D).transpose(0, 2, 1, 3)
    v = v.reshape(B, S, num_heads, D).transpose(0, 2, 1, 3)
    energy = jnp.einsum('bhqd,bhkd->bhqk', q, k) / math.sqrt(D)
    attn = jax.nn.softmax(energy, axis=-1)
    out = jnp.einsum('bhqk,bhkd->bhqd', attn, v)
    out = out.transpose(0, 2, 1, 3).reshape(B, S, E)
    out = out @ wo + bo
    return out, attn


def init_params(rng, embed_dim):
    """Deterministic init, shapes match nn.Linear(embed_dim, embed_dim)."""
    bound = 1.0 / math.sqrt(embed_dim)
    keys = jax.random.split(rng, 8)

    def w(k):
        return jax.random.uniform(k, (embed_dim, embed_dim), jnp.float32,
                                  minval=-bound, maxval=bound)

    def b(k):
        return jax.random.uniform(k, (1, embed_dim), jnp.float32,
                                  minval=-bound, maxval=bound)

    return (w(keys[0]), b(keys[1]),   # key proj
            w(keys[2]), b(keys[3]),   # query proj
            w(keys[4]), b(keys[5]),   # value proj
            w(keys[6]), b(keys[7]))   # fc_out


if __name__ == "__main__":
    B, S, E, H = 2, 8, 32, 4   # batch, seq, embed_dim, num_heads -> head_dim = 8

    root = jax.random.PRNGKey(0)
    k_in_key, q_in_key, v_in_key, p_key = jax.random.split(root, 4)
    key_in = jax.random.normal(k_in_key, (B, S, E), jnp.float32)
    query_in = jax.random.normal(q_in_key, (B, S, E), jnp.float32)
    value_in = jax.random.normal(v_in_key, (B, S, E), jnp.float32)

    params_f32 = init_params(p_key, E)
    kernel_params = prepare_params(params_f32)

    out, attn = multi_head_attention(key_in, query_in, value_in, kernel_params,
                                     num_heads=H)
    out = jax.block_until_ready(out)
    attn = jax.block_until_ready(attn)

    ref_out, ref_attn = reference_mha(key_in, query_in, value_in, params_f32,
                                      num_heads=H)
    assert out.shape == (B, S, E) and attn.shape == (B, H, S, S)
    # bf16 matmul path + bf16 attn storage + approx reciprocal -> relaxed
    # tolerances vs the f32 reference.
    assert jnp.allclose(out, ref_out, atol=2e-2, rtol=2e-2)
    assert jnp.allclose(attn.astype(jnp.float32), ref_attn, atol=2e-2, rtol=2e-2)

    print("KERNEL_OK")
</pallas_src>

<mosaic_0001>
module attributes {stable_mosaic.version = 11 : i64} {
  func.func @mha_kernel(%arg0: i32, %arg1: i32, %arg2: memref<1x8x32xbf16, #tpu.memory_space<vmem>>, %arg3: memref<1x8x32xbf16, #tpu.memory_space<vmem>>, %arg4: memref<1x8x32xbf16, #tpu.memory_space<vmem>>, %arg5: memref<3x32x32xbf16, #tpu.memory_space<vmem>>, %arg6: memref<3x1x32xf32, #tpu.memory_space<vmem>>, %arg7: memref<32x32xbf16, #tpu.memory_space<vmem>>, %arg8: memref<1x32xf32, #tpu.memory_space<vmem>>, %arg9: memref<1x8x32xf32, #tpu.memory_space<vmem>>, %arg10: memref<1x4x8x8xbf16, #tpu.memory_space<vmem>>, %arg11: memref<4x8x8xbf16, #tpu.memory_space<vmem>>, %arg12: memref<4x8x8xbf16, #tpu.memory_space<vmem>>) attributes {dimension_semantics = [#tpu.dimension_semantics<parallel>, #tpu.dimension_semantics<arbitrary>], iteration_bounds = array<i64: 2, 1>, scalar_prefetch = 0 : i64, scratch_operands = 2 : i64, tpu.core_type = #tpu.core_type<tc>, window_params = [{transform_indices = @transform_0, window_bounds = array<i64: 1, 8, 32>}, {transform_indices = @transform_1, window_bounds = array<i64: 1, 8, 32>}, {transform_indices = @transform_2, window_bounds = array<i64: 1, 8, 32>}, {pipeline_mode = #tpu.pipeline_mode<synchronous>, transform_indices = @transform_3, window_bounds = array<i64: 3, 32, 32>}, {pipeline_mode = #tpu.pipeline_mode<synchronous>, transform_indices = @transform_4, window_bounds = array<i64: 3, 1, 32>}, {pipeline_mode = #tpu.pipeline_mode<synchronous>, transform_indices = @transform_5, window_bounds = array<i64: 32, 32>}, {pipeline_mode = #tpu.pipeline_mode<synchronous>, transform_indices = @transform_6, window_bounds = array<i64: 1, 32>}, {transform_indices = @transform_7, window_bounds = array<i64: 1, 8, 32>}, {transform_indices = @transform_8, window_bounds = array<i64: 1, 4, 8, 8>}]} {
    %c0_i32 = arith.constant 0 : i32
    %0 = arith.cmpi eq, %arg1, %c0_i32 : i32
    %1 = arith.extui %0 : i1 to i32
    %c0_i32_0 = arith.constant 0 : i32
    %2 = arith.cmpi ne, %1, %c0_i32_0 : i32
    scf.if %2 {
      %c0_71 = arith.constant 0 : index
      %c0_72 = arith.constant 0 : index
      %c0_73 = arith.constant 0 : index
      %112 = vector.load %arg2[%c0_71, %c0_72, %c0_73] : memref<1x8x32xbf16, #tpu.memory_space<vmem>>, vector<1x8x32xbf16>
      %113 = vector.shape_cast %112 : vector<1x8x32xbf16> to vector<8x32xbf16>
      %c0_74 = arith.constant 0 : index
      %c0_75 = arith.constant 0 : index
      %c0_76 = arith.constant 0 : index
      %114 = vector.load %arg5[%c0_74, %c0_75, %c0_76] : memref<3x32x32xbf16, #tpu.memory_space<vmem>>, vector<1x32x32xbf16>
      %115 = vector.shape_cast %114 : vector<1x32x32xbf16> to vector<32x32xbf16>
      %cst_77 = arith.constant dense<0.000000e+00> : vector<8x32xf32>
      %116 = tpu.matmul %113, %115, %cst_77 {dimension_numbers = #tpu.dot_dimension_numbers<[1], [0], [0], [1], [0, 0, 1, 1], [], []>} : vector<8x32xbf16>, vector<32x32xbf16>, vector<8x32xf32> -> vector<8x32xf32>
      %c0_78 = arith.constant 0 : index
      %c0_79 = arith.constant 0 : index
      %c0_80 = arith.constant 0 : index
      %117 = vector.load %arg6[%c0_78, %c0_79, %c0_80] : memref<3x1x32xf32, #tpu.memory_space<vmem>>, vector<1x1x32xf32>
      %118 = vector.shape_cast %117 : vector<1x1x32xf32> to vector<1x32xf32>
      %119 = vector.broadcast %118 : vector<1x32xf32> to vector<8x32xf32>
      %120 = arith.addf %116, %119 : vector<8x32xf32>
      %c0_81 = arith.constant 0 : index
      %c0_82 = arith.constant 0 : index
      %c0_83 = arith.constant 0 : index
      %121 = vector.load %arg4[%c0_81, %c0_82, %c0_83] : memref<1x8x32xbf16, #tpu.memory_space<vmem>>, vector<1x8x32xbf16>
      %122 = vector.shape_cast %121 : vector<1x8x32xbf16> to vector<8x32xbf16>
      %c2_84 = arith.constant 2 : index
      %c0_85 = arith.constant 0 : index
      %c0_86 = arith.constant 0 : index
      %123 = vector.load %arg5[%c2_84, %c0_85, %c0_86] : memref<3x32x32xbf16, #tpu.memory_space<vmem>>, vector<1x32x32xbf16>
      %124 = vector.shape_cast %123 : vector<1x32x32xbf16> to vector<32x32xbf16>
      %cst_87 = arith.constant dense<0.000000e+00> : vector<8x32xf32>
      %125 = tpu.matmul %122, %124, %cst_87 {dimension_numbers = #tpu.dot_dimension_numbers<[1], [0], [0], [1], [0, 0, 1, 1], [], []>} : vector<8x32xbf16>, vector<32x32xbf16>, vector<8x32xf32> -> vector<8x32xf32>
      %c2_88 = arith.constant 2 : index
      %c0_89 = arith.constant 0 : index
      %c0_90 = arith.constant 0 : index
      %126 = vector.load %arg6[%c2_88, %c0_89, %c0_90] : memref<3x1x32xf32, #tpu.memory_space<vmem>>, vector<1x1x32xf32>
      %127 = vector.shape_cast %126 : vector<1x1x32xf32> to vector<1x32xf32>
      %128 = vector.broadcast %127 : vector<1x32xf32> to vector<8x32xf32>
      %129 = arith.addf %125, %128 : vector<8x32xf32>
      %130 = arith.truncf %120 : vector<8x32xf32> to vector<8x32xbf16>
      %131 = arith.truncf %129 : vector<8x32xf32> to vector<8x32xbf16>
      %132 = vector.extract_strided_slice %130 {offsets = [0, 0], sizes = [8, 8], strides = [1, 1]} : vector<8x32xbf16> to vector<8x8xbf16>
      %c0_91 = arith.constant 0 : index
      %c0_92 = arith.constant 0 : index
      %c0_93 = arith.constant 0 : index
      %133 = vector.load %arg11[%c0_91, %c0_92, %c0_93] : memref<4x8x8xbf16, #tpu.memory_space<vmem>>, vector<1x8x8xbf16>
      %134 = vector.shape_cast %133 : vector<1x8x8xbf16> to vector<8x8xbf16>
      %135 = vector.shape_cast %132 : vector<8x8xbf16> to vector<1x8x8xbf16>
      tpu.vector_store %arg11[%c0_91, %c0_92, %c0_93], %135 {strides = array<i32>} : memref<4x8x8xbf16, #tpu.memory_space<vmem>>, vector<1x8x8xbf16>,
      %136 = vector.extract_strided_slice %131 {offsets = [0, 0], sizes = [8, 8], strides = [1, 1]} : vector<8x32xbf16> to vector<8x8xbf16>
      %c0_94 = arith.constant 0 : index
      %c0_95 = arith.constant 0 : index
      %c0_96 = arith.constant 0 : index
      %137 = vector.load %arg12[%c0_94, %c0_95, %c0_96] : memref<4x8x8xbf16, #tpu.memory_space<vmem>>, vector<1x8x8xbf16>
      %138 = vector.shape_cast %137 : vector<1x8x8xbf16> to vector<8x8xbf16>
      %139 = vector.shape_cast %136 : vector<8x8xbf16> to vector<1x8x8xbf16>
      tpu.vector_store %arg12[%c0_94, %c0_95, %c0_96], %139 {strides = array<i32>} : memref<4x8x8xbf16, #tpu.memory_space<vmem>>, vector<1x8x8xbf16>,
      %140 = vector.extract_strided_slice %130 {offsets = [0, 8], sizes = [8, 8], strides = [1, 1]} : vector<8x32xbf16> to vector<8x8xbf16>
      %c1_97 = arith.constant 1 : index
      %c0_98 = arith.constant 0 : index
      %c0_99 = arith.constant 0 : index
      %141 = vector.load %arg11[%c1_97, %c0_98, %c0_99] : memref<4x8x8xbf16, #tpu.memory_space<vmem>>, vector<1x8x8xbf16>
      %142 = vector.shape_cast %141 : vector<1x8x8xbf16> to vector<8x8xbf16>
      %143 = vector.shape_cast %140 : vector<8x8xbf16> to vector<1x8x8xbf16>
      tpu.vector_store %arg11[%c1_97, %c0_98, %c0_99], %143 {strides = array<i32>} : memref<4x8x8xbf16, #tpu.memory_space<vmem>>, vector<1x8x8xbf16>,
      %144 = vector.extract_strided_slice %131 {offsets = [0, 8], sizes = [8, 8], strides = [1, 1]} : vector<8x32xbf16> to vector<8x8xbf16>
      %c1_100 = arith.constant 1 : index
      %c0_101 = arith.constant 0 : index
      %c0_102 = arith.constant 0 : index
      %145 = vector.load %arg12[%c1_100, %c0_101, %c0_102] : memref<4x8x8xbf16, #tpu.memory_space<vmem>>, vector<1x8x8xbf16>
      %146 = vector.shape_cast %145 : vector<1x8x8xbf16> to vector<8x8xbf16>
      %147 = vector.shape_cast %144 : vector<8x8xbf16> to vector<1x8x8xbf16>
      tpu.vector_store %arg12[%c1_100, %c0_101, %c0_102], %147 {strides = array<i32>} : memref<4x8x8xbf16, #tpu.memory_space<vmem>>, vector<1x8x8xbf16>,
      %148 = vector.extract_strided_slice %130 {offsets = [0, 16], sizes = [8, 8], strides = [1, 1]} : vector<8x32xbf16> to vector<8x8xbf16>
      %c2_103 = arith.constant 2 : index
      %c0_104 = arith.constant 0 : index
      %c0_105 = arith.constant 0 : index
      %149 = vector.load %arg11[%c2_103, %c0_104, %c0_105] : memref<4x8x8xbf16, #tpu.memory_space<vmem>>, vector<1x8x8xbf16>
      %150 = vector.shape_cast %149 : vector<1x8x8xbf16> to vector<8x8xbf16>
      %151 = vector.shape_cast %148 : vector<8x8xbf16> to vector<1x8x8xbf16>
      tpu.vector_store %arg11[%c2_103, %c0_104, %c0_105], %151 {strides = array<i32>} : memref<4x8x8xbf16, #tpu.memory_space<vmem>>, vector<1x8x8xbf16>,
      %152 = vector.extract_strided_slice %131 {offsets = [0, 16], sizes = [8, 8], strides = [1, 1]} : vector<8x32xbf16> to vector<8x8xbf16>
      %c2_106 = arith.constant 2 : index
      %c0_107 = arith.constant 0 : index
      %c0_108 = arith.constant 0 : index
      %153 = vector.load %arg12[%c2_106, %c0_107, %c0_108] : memref<4x8x8xbf16, #tpu.memory_space<vmem>>, vector<1x8x8xbf16>
      %154 = vector.shape_cast %153 : vector<1x8x8xbf16> to vector<8x8xbf16>
      %155 = vector.shape_cast %152 : vector<8x8xbf16> to vector<1x8x8xbf16>
      tpu.vector_store %arg12[%c2_106, %c0_107, %c0_108], %155 {strides = array<i32>} : memref<4x8x8xbf16, #tpu.memory_space<vmem>>, vector<1x8x8xbf16>,
      %156 = vector.extract_strided_slice %130 {offsets = [0, 24], sizes = [8, 8], strides = [1, 1]} : vector<8x32xbf16> to vector<8x8xbf16>
      %c3_109 = arith.constant 3 : index
      %c0_110 = arith.constant 0 : index
      %c0_111 = arith.constant 0 : index
      %157 = vector.load %arg11[%c3_109, %c0_110, %c0_111] : memref<4x8x8xbf16, #tpu.memory_space<vmem>>, vector<1x8x8xbf16>
      %158 = vector.shape_cast %157 : vector<1x8x8xbf16> to vector<8x8xbf16>
      %159 = vector.shape_cast %156 : vector<8x8xbf16> to vector<1x8x8xbf16>
      tpu.vector_store %arg11[%c3_109, %c0_110, %c0_111], %159 {strides = array<i32>} : memref<4x8x8xbf16, #tpu.memory_space<vmem>>, vector<1x8x8xbf16>,
      %160 = vector.extract_strided_slice %131 {offsets = [0, 24], sizes = [8, 8], strides = [1, 1]} : vector<8x32xbf16> to vector<8x8xbf16>
      %c3_112 = arith.constant 3 : index
      %c0_113 = arith.constant 0 : index
      %c0_114 = arith.constant 0 : index
      %161 = vector.load %arg12[%c3_112, %c0_113, %c0_114] : memref<4x8x8xbf16, #tpu.memory_space<vmem>>, vector<1x8x8xbf16>
      %162 = vector.shape_cast %161 : vector<1x8x8xbf16> to vector<8x8xbf16>
      %163 = vector.shape_cast %160 : vector<8x8xbf16> to vector<1x8x8xbf16>
      tpu.vector_store %arg12[%c3_112, %c0_113, %c0_114], %163 {strides = array<i32>} : memref<4x8x8xbf16, #tpu.memory_space<vmem>>, vector<1x8x8xbf16>,
    } else {
    }
    %c0 = arith.constant 0 : index
    %c0_1 = arith.constant 0 : index
    %c0_2 = arith.constant 0 : index
    %3 = vector.load %arg3[%c0, %c0_1, %c0_2] : memref<1x8x32xbf16, #tpu.memory_space<vmem>>, vector<1x8x32xbf16>
    %4 = vector.shape_cast %3 : vector<1x8x32xbf16> to vector<8x32xbf16>
    %c1 = arith.constant 1 : index
    %c0_3 = arith.constant 0 : index
    %c0_4 = arith.constant 0 : index
    %5 = vector.load %arg5[%c1, %c0_3, %c0_4] : memref<3x32x32xbf16, #tpu.memory_space<vmem>>, vector<1x32x32xbf16>
    %6 = vector.shape_cast %5 : vector<1x32x32xbf16> to vector<32x32xbf16>
    %cst = arith.constant dense<0.000000e+00> : vector<8x32xf32>
    %7 = tpu.matmul %4, %6, %cst {dimension_numbers = #tpu.dot_dimension_numbers<[1], [0], [0], [1], [0, 0, 1, 1], [], []>} : vector<8x32xbf16>, vector<32x32xbf16>, vector<8x32xf32> -> vector<8x32xf32>
    %c1_5 = arith.constant 1 : index
    %c0_6 = arith.constant 0 : index
    %c0_7 = arith.constant 0 : index
    %8 = vector.load %arg6[%c1_5, %c0_6, %c0_7] : memref<3x1x32xf32, #tpu.memory_space<vmem>>, vector<1x1x32xf32>
    %9 = vector.shape_cast %8 : vector<1x1x32xf32> to vector<1x32xf32>
    %10 = vector.broadcast %9 : vector<1x32xf32> to vector<8x32xf32>
    %11 = arith.addf %7, %10 : vector<8x32xf32>
    %cst_8 = arith.constant 0.353553385 : f32
    %12 = vector.broadcast %cst_8 : f32 to vector<8x32xf32>
    %13 = arith.mulf %11, %12 : vector<8x32xf32>
    %14 = arith.truncf %13 : vector<8x32xf32> to vector<8x32xbf16>
    %15 = vector.extract_strided_slice %14 {offsets = [0, 0], sizes = [8, 8], strides = [1, 1]} : vector<8x32xbf16> to vector<8x8xbf16>
    %c0_9 = arith.constant 0 : index
    %c0_10 = arith.constant 0 : index
    %c0_11 = arith.constant 0 : index
    %16 = vector.load %arg11[%c0_9, %c0_10, %c0_11] : memref<4x8x8xbf16, #tpu.memory_space<vmem>>, vector<1x8x8xbf16>
    %17 = vector.shape_cast %16 : vector<1x8x8xbf16> to vector<8x8xbf16>
    %c0_12 = arith.constant 0 : index
    %c0_13 = arith.constant 0 : index
    %c0_14 = arith.constant 0 : index
    %18 = vector.load %arg12[%c0_12, %c0_13, %c0_14] : memref<4x8x8xbf16, #tpu.memory_space<vmem>>, vector<1x8x8xbf16>
    %19 = vector.shape_cast %18 : vector<1x8x8xbf16> to vector<8x8xbf16>
    %cst_15 = arith.constant dense<0.000000e+00> : vector<8x8xf32>
    %20 = tpu.matmul %15, %17, %cst_15 {dimension_numbers = #tpu.dot_dimension_numbers<[1], [1], [0], [0], [0, 0, 1, 0], [], []>} : vector<8x8xbf16>, vector<8x8xbf16>, vector<8x8xf32> -> vector<8x8xf32>
    %cst_16 = arith.constant dense<0xFF800000> : vector<8xf32>
    %21 = vector.multi_reduction <maximumf>, %20, %cst_16 [1] : vector<8x8xf32> to vector<8xf32>
    %22 = vector.shape_cast %21 : vector<8xf32> to vector<8x1xf32>
    %23 = vector.broadcast %22 : vector<8x1xf32> to vector<8x8xf32>
    %24 = arith.subf %20, %23 : vector<8x8xf32>
    %25 = math.exp %24 : vector<8x8xf32>
    %cst_17 = arith.constant dense<0.000000e+00> : vector<8xf32>
    %26 = vector.multi_reduction <add>, %25, %cst_17 [1] : vector<8x8xf32> to vector<8xf32>
    %27 = vector.shape_cast %26 : vector<8xf32> to vector<8x1xf32>
    %28 = tpu.reciprocal %27 {approx = true} : vector<8x1xf32> -> vector<8x1xf32>
    %29 = vector.broadcast %28 : vector<8x1xf32> to vector<8x8xf32>
    %30 = arith.mulf %25, %29 : vector<8x8xf32>
    %31 = arith.truncf %30 : vector<8x8xf32> to vector<8x8xbf16>
    %c0_18 = arith.constant 0 : index
    %c0_19 = arith.constant 0 : index
    %c0_20 = arith.constant 0 : index
    %c0_21 = arith.constant 0 : index
    %32 = vector.load %arg10[%c0_18, %c0_19, %c0_20, %c0_21] : memref<1x4x8x8xbf16, #tpu.memory_space<vmem>>, vector<1x1x8x8xbf16>
    %33 = vector.shape_cast %32 : vector<1x1x8x8xbf16> to vector<8x8xbf16>
    %34 = vector.shape_cast %31 : vector<8x8xbf16> to vector<1x1x8x8xbf16>
    tpu.vector_store %arg10[%c0_18, %c0_19, %c0_20, %c0_21], %34 {strides = array<i32>} : memref<1x4x8x8xbf16, #tpu.memory_space<vmem>>, vector<1x1x8x8xbf16>,
    %cst_22 = arith.constant dense<0.000000e+00> : vector<8x8xf32>
    %35 = tpu.matmul %31, %19, %cst_22 {dimension_numbers = #tpu.dot_dimension_numbers<[1], [0], [0], [1], [0, 0, 1, 1], [], []>} : vector<8x8xbf16>, vector<8x8xbf16>, vector<8x8xf32> -> vector<8x8xf32>
    %36 = arith.truncf %35 : vector<8x8xf32> to vector<8x8xbf16>
    %37 = vector.extract_strided_slice %14 {offsets = [0, 8], sizes = [8, 8], strides = [1, 1]} : vector<8x32xbf16> to vector<8x8xbf16>
    %c1_23 = arith.constant 1 : index
    %c0_24 = arith.constant 0 : index
    %c0_25 = arith.constant 0 : index
    %38 = vector.load %arg11[%c1_23, %c0_24, %c0_25] : memref<4x8x8xbf16, #tpu.memory_space<vmem>>, vector<1x8x8xbf16>
    %39 = vector.shape_cast %38 : vector<1x8x8xbf16> to vector<8x8xbf16>
    %c1_26 = arith.constant 1 : index
    %c0_27 = arith.constant 0 : index
    %c0_28 = arith.constant 0 : index
    %40 = vector.load %arg12[%c1_26, %c0_27, %c0_28] : memref<4x8x8xbf16, #tpu.memory_space<vmem>>, vector<1x8x8xbf16>
    %41 = vector.shape_cast %40 : vector<1x8x8xbf16> to vector<8x8xbf16>
    %cst_29 = arith.constant dense<0.000000e+00> : vector<8x8xf32>
    %42 = tpu.matmul %37, %39, %cst_29 {dimension_numbers = #tpu.dot_dimension_numbers<[1], [1], [0], [0], [0, 0, 1, 0], [], []>} : vector<8x8xbf16>, vector<8x8xbf16>, vector<8x8xf32> -> vector<8x8xf32>
    %cst_30 = arith.constant dense<0xFF800000> : vector<8xf32>
    %43 = vector.multi_reduction <maximumf>, %42, %cst_30 [1] : vector<8x8xf32> to vector<8xf32>
    %44 = vector.shape_cast %43 : vector<8xf32> to vector<8x1xf32>
    %45 = vector.broadcast %44 : vector<8x1xf32> to vector<8x8xf32>
    %46 = arith.subf %42, %45 : vector<8x8xf32>
    %47 = math.exp %46 : vector<8x8xf32>
    %cst_31 = arith.constant dense<0.000000e+00> : vector<8xf32>
    %48 = vector.multi_reduction <add>, %47, %cst_31 [1] : vector<8x8xf32> to vector<8xf32>
    %49 = vector.shape_cast %48 : vector<8xf32> to vector<8x1xf32>
    %50 = tpu.reciprocal %49 {approx = true} : vector<8x1xf32> -> vector<8x1xf32>
    %51 = vector.broadcast %50 : vector<8x1xf32> to vector<8x8xf32>
    %52 = arith.mulf %47, %51 : vector<8x8xf32>
    %53 = arith.truncf %52 : vector<8x8xf32> to vector<8x8xbf16>
    %c0_32 = arith.constant 0 : index
    %c1_33 = arith.constant 1 : index
    %c0_34 = arith.constant 0 : index
    %c0_35 = arith.constant 0 : index
    %54 = vector.load %arg10[%c0_32, %c1_33, %c0_34, %c0_35] : memref<1x4x8x8xbf16, #tpu.memory_space<vmem>>, vector<1x1x8x8xbf16>
    %55 = vector.shape_cast %54 : vector<1x1x8x8xbf16> to vector<8x8xbf16>
    %56 = vector.shape_cast %53 : vector<8x8xbf16> to vector<1x1x8x8xbf16>
    tpu.vector_store %arg10[%c0_32, %c1_33, %c0_34, %c0_35], %56 {strides = array<i32>} : memref<1x4x8x8xbf16, #tpu.memory_space<vmem>>, vector<1x1x8x8xbf16>,
    %cst_36 = arith.constant dense<0.000000e+00> : vector<8x8xf32>
    %57 = tpu.matmul %53, %41, %cst_36 {dimension_numbers = #tpu.dot_dimension_numbers<[1], [0], [0], [1], [0, 0, 1, 1], [], []>} : vector<8x8xbf16>, vector<8x8xbf16>, vector<8x8xf32> -> vector<8x8xf32>
    %58 = arith.truncf %57 : vector<8x8xf32> to vector<8x8xbf16>
    %59 = vector.extract_strided_slice %14 {offsets = [0, 16], sizes = [8, 8], strides = [1, 1]} : vector<8x32xbf16> to vector<8x8xbf16>
    %c2 = arith.constant 2 : index
    %c0_37 = arith.constant 0 : index
    %c0_38 = arith.constant 0 : index
    %60 = vector.load %arg11[%c2, %c0_37, %c0_38] : memref<4x8x8xbf16, #tpu.memory_space<vmem>>, vector<1x8x8xbf16>
    %61 = vector.shape_cast %60 : vector<1x8x8xbf16> to vector<8x8xbf16>
    %c2_39 = arith.constant 2 : index
    %c0_40 = arith.constant 0 : index
    %c0_41 = arith.constant 0 : index
    %62 = vector.load %arg12[%c2_39, %c0_40, %c0_41] : memref<4x8x8xbf16, #tpu.memory_space<vmem>>, vector<1x8x8xbf16>
    %63 = vector.shape_cast %62 : vector<1x8x8xbf16> to vector<8x8xbf16>
    %cst_42 = arith.constant dense<0.000000e+00> : vector<8x8xf32>
    %64 = tpu.matmul %59, %61, %cst_42 {dimension_numbers = #tpu.dot_dimension_numbers<[1], [1], [0], [0], [0, 0, 1, 0], [], []>} : vector<8x8xbf16>, vector<8x8xbf16>, vector<8x8xf32> -> vector<8x8xf32>
    %cst_43 = arith.constant dense<0xFF800000> : vector<8xf32>
    %65 = vector.multi_reduction <maximumf>, %64, %cst_43 [1] : vector<8x8xf32> to vector<8xf32>
    %66 = vector.shape_cast %65 : vector<8xf32> to vector<8x1xf32>
    %67 = vector.broadcast %66 : vector<8x1xf32> to vector<8x8xf32>
    %68 = arith.subf %64, %67 : vector<8x8xf32>
    %69 = math.exp %68 : vector<8x8xf32>
    %cst_44 = arith.constant dense<0.000000e+00> : vector<8xf32>
    %70 = vector.multi_reduction <add>, %69, %cst_44 [1] : vector<8x8xf32> to vector<8xf32>
    %71 = vector.shape_cast %70 : vector<8xf32> to vector<8x1xf32>
    %72 = tpu.reciprocal %71 {approx = true} : vector<8x1xf32> -> vector<8x1xf32>
    %73 = vector.broadcast %72 : vector<8x1xf32> to vector<8x8xf32>
    %74 = arith.mulf %69, %73 : vector<8x8xf32>
    %75 = arith.truncf %74 : vector<8x8xf32> to vector<8x8xbf16>
    %c0_45 = arith.constant 0 : index
    %c2_46 = arith.constant 2 : index
    %c0_47 = arith.constant 0 : index
    %c0_48 = arith.constant 0 : index
    %76 = vector.load %arg10[%c0_45, %c2_46, %c0_47, %c0_48] : memref<1x4x8x8xbf16, #tpu.memory_space<vmem>>, vector<1x1x8x8xbf16>
    %77 = vector.shape_cast %76 : vector<1x1x8x8xbf16> to vector<8x8xbf16>
    %78 = vector.shape_cast %75 : vector<8x8xbf16> to vector<1x1x8x8xbf16>
    tpu.vector_store %arg10[%c0_45, %c2_46, %c0_47, %c0_48], %78 {strides = array<i32>} : memref<1x4x8x8xbf16, #tpu.memory_space<vmem>>, vector<1x1x8x8xbf16>,
    %cst_49 = arith.constant dense<0.000000e+00> : vector<8x8xf32>
    %79 = tpu.matmul %75, %63, %cst_49 {dimension_numbers = #tpu.dot_dimension_numbers<[1], [0], [0], [1], [0, 0, 1, 1], [], []>} : vector<8x8xbf16>, vector<8x8xbf16>, vector<8x8xf32> -> vector<8x8xf32>
    %80 = arith.truncf %79 : vector<8x8xf32> to vector<8x8xbf16>
    %81 = vector.extract_strided_slice %14 {offsets = [0, 24], sizes = [8, 8], strides = [1, 1]} : vector<8x32xbf16> to vector<8x8xbf16>
    %c3 = arith.constant 3 : index
    %c0_50 = arith.constant 0 : index
    %c0_51 = arith.constant 0 : index
    %82 = vector.load %arg11[%c3, %c0_50, %c0_51] : memref<4x8x8xbf16, #tpu.memory_space<vmem>>, vector<1x8x8xbf16>
    %83 = vector.shape_cast %82 : vector<1x8x8xbf16> to vector<8x8xbf16>
    %c3_52 = arith.constant 3 : index
    %c0_53 = arith.constant 0 : index
    %c0_54 = arith.constant 0 : index
    %84 = vector.load %arg12[%c3_52, %c0_53, %c0_54] : memref<4x8x8xbf16, #tpu.memory_space<vmem>>, vector<1x8x8xbf16>
    %85 = vector.shape_cast %84 : vector<1x8x8xbf16> to vector<8x8xbf16>
    %cst_55 = arith.constant dense<0.000000e+00> : vector<8x8xf32>
    %86 = tpu.matmul %81, %83, %cst_55 {dimension_numbers = #tpu.dot_dimension_numbers<[1], [1], [0], [0], [0, 0, 1, 0], [], []>} : vector<8x8xbf16>, vector<8x8xbf16>, vector<8x8xf32> -> vector<8x8xf32>
    %cst_56 = arith.constant dense<0xFF800000> : vector<8xf32>
    %87 = vector.multi_reduction <maximumf>, %86, %cst_56 [1] : vector<8x8xf32> to vector<8xf32>
    %88 = vector.shape_cast %87 : vector<8xf32> to vector<8x1xf32>
    %89 = vector.broadcast %88 : vector<8x1xf32> to vector<8x8xf32>
    %90 = arith.subf %86, %89 : vector<8x8xf32>
    %91 = math.exp %90 : vector<8x8xf32>
    %cst_57 = arith.constant dense<0.000000e+00> : vector<8xf32>
    %92 = vector.multi_reduction <add>, %91, %cst_57 [1] : vector<8x8xf32> to vector<8xf32>
    %93 = vector.shape_cast %92 : vector<8xf32> to vector<8x1xf32>
    %94 = tpu.reciprocal %93 {approx = true} : vector<8x1xf32> -> vector<8x1xf32>
    %95 = vector.broadcast %94 : vector<8x1xf32> to vector<8x8xf32>
    %96 = arith.mulf %91, %95 : vector<8x8xf32>
    %97 = arith.truncf %96 : vector<8x8xf32> to vector<8x8xbf16>
    %c0_58 = arith.constant 0 : index
    %c3_59 = arith.constant 3 : index
    %c0_60 = arith.constant 0 : index
    %c0_61 = arith.constant 0 : index
    %98 = vector.load %arg10[%c0_58, %c3_59, %c0_60, %c0_61] : memref<1x4x8x8xbf16, #tpu.memory_space<vmem>>, vector<1x1x8x8xbf16>
    %99 = vector.shape_cast %98 : vector<1x1x8x8xbf16> to vector<8x8xbf16>
    %100 = vector.shape_cast %97 : vector<8x8xbf16> to vector<1x1x8x8xbf16>
    tpu.vector_store %arg10[%c0_58, %c3_59, %c0_60, %c0_61], %100 {strides = array<i32>} : memref<1x4x8x8xbf16, #tpu.memory_space<vmem>>, vector<1x1x8x8xbf16>,
    %cst_62 = arith.constant dense<0.000000e+00> : vector<8x8xf32>
    %101 = tpu.matmul %97, %85, %cst_62 {dimension_numbers = #tpu.dot_dimension_numbers<[1], [0], [0], [1], [0, 0, 1, 1], [], []>} : vector<8x8xbf16>, vector<8x8xbf16>, vector<8x8xf32> -> vector<8x8xf32>
    %102 = arith.truncf %101 : vector<8x8xf32> to vector<8x8xbf16>
    %103 = tpu.concatenate %36, %58, %80, %102 in 1 : vector<8x8xbf16>, vector<8x8xbf16>, vector<8x8xbf16>, vector<8x8xbf16> -> vector<8x32xbf16>
    %c0_63 = arith.constant 0 : index
    %c0_64 = arith.constant 0 : index
    %104 = vector.load %arg7[%c0_63, %c0_64] : memref<32x32xbf16, #tpu.memory_space<vmem>>, vector<32x32xbf16>
    %cst_65 = arith.constant dense<0.000000e+00> : vector<8x32xf32>
    %105 = tpu.matmul %103, %104, %cst_65 {dimension_numbers = #tpu.dot_dimension_numbers<[1], [0], [0], [1], [0, 0, 1, 1], [], []>} : vector<8x32xbf16>, vector<32x32xbf16>, vector<8x32xf32> -> vector<8x32xf32>
    %c0_66 = arith.constant 0 : index
    %c0_67 = arith.constant 0 : index
    %106 = vector.load %arg8[%c0_66, %c0_67] : memref<1x32xf32, #tpu.memory_space<vmem>>, vector<1x32xf32>
    %107 = vector.broadcast %106 : vector<1x32xf32> to vector<8x32xf32>
    %108 = arith.addf %105, %107 : vector<8x32xf32>
    %c0_68 = arith.constant 0 : index
    %c0_69 = arith.constant 0 : index
    %c0_70 = arith.constant 0 : index
    %109 = vector.load %arg9[%c0_68, %c0_69, %c0_70] : memref<1x8x32xf32, #tpu.memory_space<vmem>>, vector<1x8x32xf32>
    %110 = vector.shape_cast %109 : vector<1x8x32xf32> to vector<8x32xf32>
    %111 = vector.shape_cast %108 : vector<8x32xf32> to vector<1x8x32xf32>
    tpu.vector_store %arg9[%c0_68, %c0_69, %c0_70], %111 {strides = array<i32>} : memref<1x8x32xf32, #tpu.memory_space<vmem>>, vector<1x8x32xf32>,
    return
  }
  func.func @transform_0(%arg0: i32, %arg1: i32) -> (i32, i32, i32) {
    %c0_i32 = arith.constant 0 : i32
    %c0_i32_0 = arith.constant 0 : i32
    %c0_i32_1 = arith.constant 0 : i32
    return %arg0, %c0_i32, %c0_i32_0 : i32, i32, i32
  }
  func.func @transform_1(%arg0: i32, %arg1: i32) -> (i32, i32, i32) {
    %c0_i32 = arith.constant 0 : i32
    %c0_i32_0 = arith.constant 0 : i32
    return %arg0, %arg1, %c0_i32 : i32, i32, i32
  }
  func.func @transform_2(%arg0: i32, %arg1: i32) -> (i32, i32, i32) {
    %c0_i32 = arith.constant 0 : i32
    %c0_i32_0 = arith.constant 0 : i32
    %c0_i32_1 = arith.constant 0 : i32
    return %arg0, %c0_i32, %c0_i32_0 : i32, i32, i32
  }
  func.func @transform_3(%arg0: i32, %arg1: i32) -> (i32, i32, i32) {
    %c0_i32 = arith.constant 0 : i32
    %c0_i32_0 = arith.constant 0 : i32
    %c0_i32_1 = arith.constant 0 : i32
    %c0_i32_2 = arith.constant 0 : i32
    return %c0_i32, %c0_i32_0, %c0_i32_1 : i32, i32, i32
  }
  func.func @transform_4(%arg0: i32, %arg1: i32) -> (i32, i32, i32) {
    %c0_i32 = arith.constant 0 : i32
    %c0_i32_0 = arith.constant 0 : i32
    %c0_i32_1 = arith.constant 0 : i32
    %c0_i32_2 = arith.constant 0 : i32
    return %c0_i32, %c0_i32_0, %c0_i32_1 : i32, i32, i32
  }
  func.func @transform_5(%arg0: i32, %arg1: i32) -> (i32, i32) {
    %c0_i32 = arith.constant 0 : i32
    %c0_i32_0 = arith.constant 0 : i32
    %c0_i32_1 = arith.constant 0 : i32
    return %c0_i32, %c0_i32_0 : i32, i32
  }
  func.func @transform_6(%arg0: i32, %arg1: i32) -> (i32, i32) {
    %c0_i32 = arith.constant 0 : i32
    %c0_i32_0 = arith.constant 0 : i32
    %c0_i32_1 = arith.constant 0 : i32
    return %c0_i32, %c0_i32_0 : i32, i32
  }
  func.func @transform_7(%arg0: i32, %arg1: i32) -> (i32, i32, i32) {
    %c0_i32 = arith.constant 0 : i32
    %c0_i32_0 = arith.constant 0 : i32
    return %arg0, %arg1, %c0_i32 : i32, i32, i32
  }
  func.func @transform_8(%arg0: i32, %arg1: i32) -> (i32, i32, i32, i32) {
    %c0_i32 = arith.constant 0 : i32
    %c0_i32_0 = arith.constant 0 : i32
    %c0_i32_1 = arith.constant 0 : i32
    return %arg0, %c0_i32, %arg1, %c0_i32_0 : i32, i32, i32, i32
  }
}

</mosaic_0001>

<llo_original>
// kernel: tpu_custom_call.1
$region0: #{tpu_custom_call.1}
  #allocation0 [shape = 'u32[]', space=smem, size = 0x4, offset = 0x4, fixed_abs, tag = 'smem constant byte address 0x4 - core index']
  #allocation1 [shape = 'u32[72,128]{1,0:T(1,128)}', space=vmem, size = 0x9000, scoped, tag = 'internal scratch']
  #allocation2 [shape = 'bf16[4,8,8]{2,1,0:T(8,128)(2,1)}', space=vmem, size = 0x2000, scoped, tag = 'scratch operand']
  #allocation3 [shape = 'bf16[4,8,8]{2,1,0:T(8,128)(2,1)}', space=vmem, size = 0x2000, scoped, tag = 'scratch operand']
  %s0 = inlined_call_operand.hbm [shape: bf16[2,8,32], index: 0, kind: input, shape index: {}]
  %s1 = inlined_call_operand.hbm [shape: bf16[2,8,32], index: 1, kind: input, shape index: {}]
  %s2 = inlined_call_operand.hbm [shape: bf16[2,8,32], index: 2, kind: input, shape index: {}]
  %s3 = inlined_call_operand.hbm [shape: bf16[3,32,32], index: 3, kind: input, shape index: {}]
  %s4 = inlined_call_operand.vmem [shape: f32[3,1,32], index: 4, kind: input, shape index: {}]
  %s5 = inlined_call_operand.hbm [shape: bf16[32,32], index: 5, kind: input, shape index: {}]
  %s6 = inlined_call_operand.vmem [shape: f32[1,32], index: 6, kind: input, shape index: {}]
  %s7 = inlined_call_operand.hbm [shape: f32[2,8,32], index: 7, kind: output, shape index: {0}]
  %s8 = inlined_call_operand.hbm [shape: bf16[2,4,8,8], index: 8, kind: output, shape index: {1}]
  %9 = xla_tuple %s7, %s8
  %s10 = sld [smem:[#allocation0]]
  $region93: #{tpu_custom_call.1} parent=0
    _
  %s12 = ssub.s32 1, %s10
  %s13 = scalar_select 0, %s12, %s10
  $region1: #{tpu_custom_call.1} parent=0
    #allocation4 [shape = 'u8[4096]{0}', space=vmem, size = 0x1000, scoped, tag = 'input window, operand 0']
    #allocation5 [shape = 's32[2]{0}', space=sflag, size = 0x8, scoped, tag = 'scoped memory for tpu_custom_call.1']
    #allocation6 [shape = 's32[2]{0}', space=sflag, size = 0x8, scoped, tag = 'scoped memory for tpu_custom_call.1']
    #allocation7 [shape = 'u8[4096]{0}', space=vmem, size = 0x1000, scoped, tag = 'input window, operand 1']
    #allocation8 [shape = 's32[2]{0}', space=sflag, size = 0x8, scoped, tag = 'scoped memory for tpu_custom_call.1']
    #allocation9 [shape = 'u8[4096]{0}', space=vmem, size = 0x1000, scoped, tag = 'input window, operand 2']
    #allocation10 [shape = 'u8[24576]{0}', space=vmem, size = 0x6000, scoped, tag = 'input window, operand 3, single buffered']
    #allocation11 [shape = 's32[1]{0}', space=sflag, size = 0x4, scoped, tag = 'scoped memory for tpu_custom_call.1']
    #allocation12 [shape = 'u8[8192]{0}', space=vmem, size = 0x2000, scoped, tag = 'input window, operand 5, single buffered']
    #allocation13 [shape = 'u8[8192]{0}', space=vmem, size = 0x2000, scoped, tag = 'output window, operand 0']
    #allocation14 [shape = 'u8[16384]{0}', space=vmem, size = 0x4000, scoped, tag = 'output window, operand 1']
    #allocation15 [shape = 's32[2]{0}', space=sflag, size = 0x8, scoped, tag = 'scoped memory for tpu_custom_call.1']
    %14 = vsyncpa [#allocation5], 0
    %s15 = scalar_lea.sflag [#allocation5], 1
    %16 = vsyncpa %s15, 0
    %17 = vsyncpa [#allocation8], 0
    %s18 = scalar_lea.sflag [#allocation8], 1
    %19 = vsyncpa %s18, 0
    %20 = vsyncpa [#allocation11], 0
    %21 = vsyncpa [#allocation6], 0
    %s22 = scalar_lea.sflag [#allocation6], 1
    %23 = vsyncpa %s22, 0
    %24 = vsyncpa [#allocation15], 0
    %s25 = scalar_lea.sflag [#allocation15], 1
    %26 = vsyncpa %s25, 0
    loop: start=0, step=1, limit=4
    $region2: #{tpu_custom_call.1} parent=1 // loop_pre_header
      _
    $region3: #{tpu_custom_call.1} parent=1 // loop_header
      %s28 = sphi 0, %s32
      %p29 = scmp.ge.s32.totalorder %s28, 4
      %s35 = sphi 0, %s47
      %s36 = sphi 0, %s43
      %s37 = sphi 0, %s35
      %s38 = sphi 0, %s36
      %s39 = sphi 0, %s37
      %s40 = sphi 0, %s38
      %s50 = sphi 0, %s52
      %s53 = sphi 0, %s50
      %s54 = sphi 0, %s53
      %s70 = sphi 0, %s54
      %s78 = sphi 0, %s80
      %s81 = sphi 0, %s78
      %s82 = sphi 0, %s81
      %s98 = sphi 0, %s82
      %s104 = sphi 0, %s106
      %s107 = sphi 0, %s104
      %s108 = sphi 0, %s107
      %s124 = sphi 0, %s108
      %s128 = sphi 0, %s128
      %s130 = sphi 0, %s128
      %s131 = sphi 0, %s130
      %s145 = sphi 0, %s131
      %s149 = sphi 0, %s149
      %s151 = sphi 0, %s149
      %s152 = sphi 0, %s151
      %s166 = sphi 0, %s152
      %s170 = sphi 0, %s170
      %s172 = sphi 0, %s170
      %s173 = sphi 0, %s172
      %s187 = sphi 0, %s173
      %s191 = sphi 0, %s191
      %s193 = sphi 0, %s191
      %s194 = sphi 0, %s193
      %s208 = sphi 0, %s194
      %s216 = sphi 0, %s218
      %s219 = sphi 0, %s216
      %s220 = sphi 0, %s219
      %s236 = sphi 0, %s220
      %s244 = sphi 0, %s246
      %s247 = sphi 0, %s244
      %s248 = sphi 0, %s247
      %s264 = sphi 0, %s248
    $region4: #{tpu_custom_call.1} parent=1 // loop_header_branch
      %31 = sbr.rel (%p29) target = $region8
    $region5: #{tpu_custom_call.1} parent=1 // loop_body
      %s33 = ssub.s32 %s28, 1
      %s34 = ssub.s32 %s28, 2
      %s41 = sadd.s32 1, %s36
      %p42 = scmp.ge.s32.totalorder %s41, 1
      %s43 = scalar_select %p42, 0, %s41
      %s44 = sadd.s32 1, %s35
      %s45 = scalar_select %p42, %s44, %s35
      %p46 = scmp.ge.s32.totalorder %s45, 2
      %s47 = scalar_select %p46, 0, %s45
      %s48 = ssub.s32 %s35, %s47
      %p49 = scmp.eq.s32.totalorder %s48, 0
      %s51 = sadd.s32 %s50, 1
      %s52 = scalar_select %p49, %s50, %s51
      %p55 = pneg %p49
      %p56 = scmp.eq.s32.totalorder %s28, 1
      %p57 = por %p55, %p56
      %p58 = scmp.ne.s32.totalorder %s50, %s53
      %p59 = scmp.eq.s32.totalorder %s28, 0
      %p60 = por %p58, %p59
      %p61 = scmp.ne.s32.totalorder %s50, %s53
      %p62 = scmp.eq.s32.totalorder %s33, 1
      %p63 = por %p61, %p62
      %p64 = scmp.ne.s32.totalorder %s53, %s54
      %p65 = scmp.eq.s32.totalorder %s33, 0
      %p66 = por %p64, %p65
      %p67 = scmp.ne.s32.totalorder %s53, %s54
      %p68 = scmp.eq.s32.totalorder %s34, 1
      %p69 = por %p67, %p68
      %p71 = scmp.ne.s32.totalorder %s54, %s70
      %p72 = scmp.eq.s32.totalorder %s34, 0
      %p73 = por %p71, %p72
      %s74 = ssub.s32 %s35, %s47
      %s75 = ssub.s32 %s36, %s43
      %s76 = sor.u32 %s74, %s75
      %p77 = scmp.eq.s32.totalorder %s76, 0
      %s79 = sadd.s32 %s78, 1
      %s80 = scalar_select %p77, %s78, %s79
      %p83 = pneg %p77
      %p84 = scmp.eq.s32.totalorder %s28, 1
      %p85 = por %p83, %p84
      %p86 = scmp.ne.s32.totalorder %s78, %s81
      %p87 = scmp.eq.s32.totalorder %s28, 0
      %p88 = por %p86, %p87
      %p89 = scmp.ne.s32.totalorder %s78, %s81
      %p90 = scmp.eq.s32.totalorder %s33, 1
      %p91 = por %p89, %p90
      %p92 = scmp.ne.s32.totalorder %s81, %s82
      %p93 = scmp.eq.s32.totalorder %s33, 0
      %p94 = por %p92, %p93
      %p95 = scmp.ne.s32.totalorder %s81, %s82
      %p96 = scmp.eq.s32.totalorder %s34, 1
      %p97 = por %p95, %p96
      %p99 = scmp.ne.s32.totalorder %s82, %s98
      %p100 = scmp.eq.s32.totalorder %s34, 0
      %p101 = por %p99, %p100
      %s102 = ssub.s32 %s35, %s47
      %p103 = scmp.eq.s32.totalorder %s102, 0
      %s105 = sadd.s32 %s104, 1
      %s106 = scalar_select %p103, %s104, %s105
      %p109 = pneg %p103
      %p110 = scmp.eq.s32.totalorder %s28, 1
      %p111 = por %p109, %p110
      %p112 = scmp.ne.s32.totalorder %s104, %s107
      %p113 = scmp.eq.s32.totalorder %s28, 0
      %p114 = por %p112, %p113
      %p115 = scmp.ne.s32.totalorder %s104, %s107
      %p116 = scmp.eq.s32.totalorder %s33, 1
      %p117 = por %p115, %p116
      %p118 = scmp.ne.s32.totalorder %s107, %s108
      %p119 = scmp.eq.s32.totalorder %s33, 0
      %p120 = por %p118, %p119
      %p121 = scmp.ne.s32.totalorder %s107, %s108
      %p122 = scmp.eq.s32.totalorder %s34, 1
      %p123 = por %p121, %p122
      %p125 = scmp.ne.s32.totalorder %s108, %s124
      %p126 = scmp.eq.s32.totalorder %s34, 0
      %p127 = por %p125, %p126
      %s129 = sadd.s32 %s128, 1
      %p132 = scmp.eq.s32.totalorder %s28, 1
      %p133 = scmp.ne.s32.totalorder %s128, %s130
      %p134 = scmp.eq.s32.totalorder %s28, 0
      %p135 = por %p133, %p134
      %p136 = scmp.ne.s32.totalorder %s128, %s130
      %p137 = scmp.eq.s32.totalorder %s33, 1
      %p138 = por %p136, %p137
      %p139 = scmp.ne.s32.totalorder %s130, %s131
      %p140 = scmp.eq.s32.totalorder %s33, 0
      %p141 = por %p139, %p140
      %p142 = scmp.ne.s32.totalorder %s130, %s131
      %p143 = scmp.eq.s32.totalorder %s34, 1
      %p144 = por %p142, %p143
      %p146 = scmp.ne.s32.totalorder %s131, %s145
      %p147 = scmp.eq.s32.totalorder %s34, 0
      %p148 = por %p146, %p147
      %s150 = sadd.s32 %s149, 1
      %p153 = scmp.eq.s32.totalorder %s28, 1
      %p154 = scmp.ne.s32.totalorder %s149, %s151
      %p155 = scmp.eq.s32.totalorder %s28, 0
      %p156 = por %p154, %p155
      %p157 = scmp.ne.s32.totalorder %s149, %s151
      %p158 = scmp.eq.s32.totalorder %s33, 1
      %p159 = por %p157, %p158
      %p160 = scmp.ne.s32.totalorder %s151, %s152
      %p161 = scmp.eq.s32.totalorder %s33, 0
      %p162 = por %p160, %p161
      %p163 = scmp.ne.s32.totalorder %s151, %s152
      %p164 = scmp.eq.s32.totalorder %s34, 1
      %p165 = por %p163, %p164
      %p167 = scmp.ne.s32.totalorder %s152, %s166
      %p168 = scmp.eq.s32.totalorder %s34, 0
      %p169 = por %p167, %p168
      %s171 = sadd.s32 %s170, 1
      %p174 = scmp.eq.s32.totalorder %s28, 1
      %p175 = scmp.ne.s32.totalorder %s170, %s172
      %p176 = scmp.eq.s32.totalorder %s28, 0
      %p177 = por %p175, %p176
      %p178 = scmp.ne.s32.totalorder %s170, %s172
      %p179 = scmp.eq.s32.totalorder %s33, 1
      %p180 = por %p178, %p179
      %p181 = scmp.ne.s32.totalorder %s172, %s173
      %p182 = scmp.eq.s32.totalorder %s33, 0
      %p183 = por %p181, %p182
      %p184 = scmp.ne.s32.totalorder %s172, %s173
      %p185 = scmp.eq.s32.totalorder %s34, 1
      %p186 = por %p184, %p185
      %p188 = scmp.ne.s32.totalorder %s173, %s187
      %p189 = scmp.eq.s32.totalorder %s34, 0
      %p190 = por %p188, %p189
      %s192 = sadd.s32 %s191, 1
      %p195 = scmp.eq.s32.totalorder %s28, 1
      %p196 = scmp.ne.s32.totalorder %s191, %s193
      %p197 = scmp.eq.s32.totalorder %s28, 0
      %p198 = por %p196, %p197
      %p199 = scmp.ne.s32.totalorder %s191, %s193
      %p200 = scmp.eq.s32.totalorder %s33, 1
      %p201 = por %p199, %p200
      %p202 = scmp.ne.s32.totalorder %s193, %s194
      %p203 = scmp.eq.s32.totalorder %s33, 0
      %p204 = por %p202, %p203
      %p205 = scmp.ne.s32.totalorder %s193, %s194
      %p206 = scmp.eq.s32.totalorder %s34, 1
      %p207 = por %p205, %p206
      %p209 = scmp.ne.s32.totalorder %s194, %s208
      %p210 = scmp.eq.s32.totalorder %s34, 0
      %p211 = por %p209, %p210
      %s212 = ssub.s32 %s35, %s47
      %s213 = ssub.s32 %s36, %s43
      %s214 = sor.u32 %s212, %s213
      %p215 = scmp.eq.s32.totalorder %s214, 0
      %s217 = sadd.s32 %s216, 1
      %s218 = scalar_select %p215, %s216, %s217
      %p221 = pneg %p215
      %p222 = scmp.eq.s32.totalorder %s28, 1
      %p223 = por %p221, %p222
      %p224 = scmp.ne.s32.totalorder %s216, %s219
      %p225 = scmp.eq.s32.totalorder %s28, 0
      %p226 = por %p224, %p225
      %p227 = scmp.ne.s32.totalorder %s216, %s219
      %p228 = scmp.eq.s32.totalorder %s33, 1
      %p229 = por %p227, %p228
      %p230 = scmp.ne.s32.totalorder %s219, %s220
      %p231 = scmp.eq.s32.totalorder %s33, 0
      %p232 = por %p230, %p231
      %p233 = scmp.ne.s32.totalorder %s219, %s220
      %p234 = scmp.eq.s32.totalorder %s34, 1
      %p235 = por %p233, %p234
      %p237 = scmp.ne.s32.totalorder %s220, %s236
      %p238 = scmp.eq.s32.totalorder %s34, 0
      %p239 = por %p237, %p238
      %s240 = ssub.s32 %s35, %s47
      %s241 = ssub.s32 %s36, %s43
      %s242 = sor.u32 %s240, %s241
      %p243 = scmp.eq.s32.totalorder %s242, 0
      %s245 = sadd.s32 %s244, 1
      %s246 = scalar_select %p243, %s244, %s245
      %p249 = pneg %p243
      %p250 = scmp.eq.s32.totalorder %s28, 1
      %p251 = por %p249, %p250
      %p252 = scmp.ne.s32.totalorder %s244, %s247
      %p253 = scmp.eq.s32.totalorder %s28, 0
      %p254 = por %p252, %p253
      %p255 = scmp.ne.s32.totalorder %s244, %s247
      %p256 = scmp.eq.s32.totalorder %s33, 1
      %p257 = por %p255, %p256
      %p258 = scmp.ne.s32.totalorder %s247, %s248
      %p259 = scmp.eq.s32.totalorder %s33, 0
      %p260 = por %p258, %p259
      %p261 = scmp.ne.s32.totalorder %s247, %s248
      %p262 = scmp.eq.s32.totalorder %s34, 1
      %p263 = por %p261, %p262
      %p265 = scmp.ne.s32.totalorder %s248, %s264
      %p266 = scmp.eq.s32.totalorder %s34, 0
      %p267 = por %p265, %p266
      %p268 = scmp.le.s32.totalorder 1, %s28
      %p269 = scmp.lt.s32.totalorder %s28, 3
      %p270 = pnand %p268, %p269
      %p271 = pneg %p270
      // Predicated region
      $region9: #{tpu_custom_call.1} parent=5 // pred_check
        _
      $region10: #{tpu_custom_call.1} parent=5 // pred_check_branch
        %273 = sbr.rel (%p270) target = $region12
      $region11: #{tpu_custom_call.1} parent=5 // pred_region
        %s274 = ssub.s32 %s28, 1
        // Predicated region
        $region13: #{tpu_custom_call.1} parent=11 // pred_check
          %p275 = pneg %p141
        $region14: #{tpu_custom_call.1} parent=11 // pred_check_branch
          %277 = sbr.rel (%p275) target = $region16
        $region15: #{tpu_custom_call.1} parent=11 // pred_region
          %279 = vsyncadd [#allocation11], 0
          %s280 = sshll.u32 %s3, 4
          %s281 = int_to_ptr.hbm [resolvable:$true] %s280
          %s282 = sshll.u32 [#allocation10], 4
          %s283 = int_to_ptr.vmem [resolvable:$true] %s282
          %288 = dma.hbm_to_vmem [thread:$0]  %s281, 768, %s283, [#allocation11], 64, 64, 4
        $region16: #{tpu_custom_call.1} parent=11 // pred_fallthru
          _
        // Predicated region
        $region17: #{tpu_custom_call.1} parent=11 // pred_check
          %p289 = pneg %p162
        $region18: #{tpu_custom_call.1} parent=11 // pred_check_branch
          %291 = sbr.rel (%p289) target = $region20
        $region19: #{tpu_custom_call.1} parent=11 // pred_region
          _
        $region20: #{tpu_custom_call.1} parent=11 // pred_fallthru
          _
        // Predicated region
        $region21: #{tpu_custom_call.1} parent=11 // pred_check
          %p292 = pneg %p183
        $region22: #{tpu_custom_call.1} parent=11 // pred_check_branch
          %294 = sbr.rel (%p292) target = $region24
        $region23: #{tpu_custom_call.1} parent=11 // pred_region
          %296 = vsyncadd [#allocation11], 0
          %s297 = sshll.u32 %s5, 4
          %s298 = int_to_ptr.hbm [resolvable:$true] %s297
          %s299 = sshll.u32 [#allocation12], 4
          %s300 = int_to_ptr.vmem [resolvable:$true] %s299
          %305 = dma.hbm_to_vmem [thread:$0]  %s298, 256, %s300, [#allocation11], 64, 64, 4
        $region24: #{tpu_custom_call.1} parent=11 // pred_fallthru
          _
        // Predicated region
        $region25: #{tpu_custom_call.1} parent=11 // pred_check
          %p306 = pneg %p204
        $region26: #{tpu_custom_call.1} parent=11 // pred_check_branch
          %308 = sbr.rel (%p306) target = $region28
        $region27: #{tpu_custom_call.1} parent=11 // pred_region
          _
        $region28: #{tpu_custom_call.1} parent=11 // pred_fallthru
          _
      $region12: #{tpu_custom_call.1} parent=5 // pred_fallthru
        _
      %p309 = scmp.lt.s32.totalorder %s28, 2
      // Predicated region
      $region29: #{tpu_custom_call.1} parent=5 // pred_check
        %p310 = pneg %p309
      $region30: #{tpu_custom_call.1} parent=5 // pred_check_branch
        %312 = sbr.rel (%p310) target = $region32
      $region31: #{tpu_custom_call.1} parent=5 // pred_region
        // Predicated region
        $region33: #{tpu_custom_call.1} parent=31 // pred_check
          %p313 = pneg %p60
        $region34: #{tpu_custom_call.1} parent=31 // pred_check_branch
          %315 = sbr.rel (%p313) target = $region36
        $region35: #{tpu_custom_call.1} parent=31 // pred_region
          %s316 = sand.u32 %s50, 1
          %s317 = scalar_lea.sflag [#allocation5], %s316
          %s318 = sand.u32 %s50, 1
          %s319 = smul.addr %s318, 4
          %s320 = scalar_lea.vmem [#allocation4], %s319
          %322 = vsyncadd %s317, 0
          %s323 = smul.addr %s35, 4
          %s324 = scalar_lea.hbm %s0, %s323
          %s326 = sshll.u32 %s324, 4
          %s327 = int_to_ptr.hbm [resolvable:$true] %s326
          %s328 = sshll.u32 %s320, 4
          %s329 = int_to_ptr.vmem [resolvable:$true] %s328
          %331 = dma.hbm_to_vmem [thread:$0]  %s327, 64, %s329, %s317
        $region36: #{tpu_custom_call.1} parent=31 // pred_fallthru
          _
        // Predicated region
        $region37: #{tpu_custom_call.1} parent=31 // pred_check
          %p332 = pneg %p88
        $region38: #{tpu_custom_call.1} parent=31 // pred_check_branch
          %334 = sbr.rel (%p332) target = $region40
        $region39: #{tpu_custom_call.1} parent=31 // pred_region
          %s335 = sand.u32 %s28, 1
          %s336 = scalar_lea.sflag [#allocation8], %s335
          %s337 = sand.u32 %s78, 1
          %s338 = smul.addr %s337, 4
          %s339 = scalar_lea.vmem [#allocation7], %s338
          %341 = vsyncadd %s336, 0
          %s342 = sadd.s32 %s36, %s35
          %s343 = smul.addr %s342, 4
          %s344 = scalar_lea.hbm %s1, %s343
          %s346 = sshll.u32 %s344, 4
          %s347 = int_to_ptr.hbm [resolvable:$true] %s346
          %s348 = sshll.u32 %s339, 4
          %s349 = int_to_ptr.vmem [resolvable:$true] %s348
          %351 = dma.hbm_to_vmem [thread:$0]  %s347, 64, %s349, %s336
        $region40: #{tpu_custom_call.1} parent=31 // pred_fallthru
          _
        // Predicated region
        $region41: #{tpu_custom_call.1} parent=31 // pred_check
          %p352 = pneg %p114
        $region42: #{tpu_custom_call.1} parent=31 // pred_check_branch
          %354 = sbr.rel (%p352) target = $region44
        $region43: #{tpu_custom_call.1} parent=31 // pred_region
          %s355 = sand.u32 %s28, 1
          %s356 = scalar_lea.sflag [#allocation8], %s355
          %s357 = sand.u32 %s104, 1
          %s358 = smul.addr %s357, 4
          %s359 = scalar_lea.vmem [#allocation9], %s358
          %361 = vsyncadd %s356, 0
          %s362 = smul.addr %s35, 4
          %s363 = scalar_lea.hbm %s2, %s362
          %s365 = sshll.u32 %s363, 4
          %s366 = int_to_ptr.hbm [resolvable:$true] %s365
          %s367 = sshll.u32 %s359, 4
          %s368 = int_to_ptr.vmem [resolvable:$true] %s367
          %370 = dma.hbm_to_vmem [thread:$0]  %s366, 64, %s368, %s356
        $region44: #{tpu_custom_call.1} parent=31 // pred_fallthru
          _
      $region32: #{tpu_custom_call.1} parent=5 // pred_fallthru
        _
      %p371 = scmp.le.s32.totalorder 1, %s28
      %p372 = scmp.lt.s32.totalorder %s28, 3
      %p373 = pnand %p371, %p372
      %p374 = pneg %p373
      // Predicated region
      $region45: #{tpu_custom_call.1} parent=5 // pred_check
        _
      $region46: #{tpu_custom_call.1} parent=5 // pred_check_branch
        %376 = sbr.rel (%p373) target = $region48
      $region47: #{tpu_custom_call.1} parent=5 // pred_region
        %s377 = ssub.s32 %s28, 1
        %s378 = sand.u32 %s53, 1
        %s379 = scalar_lea.sflag [#allocation5], %s378
        %s380 = sand.u32 %s53, 1
        %s381 = smul.addr %s380, 4
        %s382 = scalar_lea.vmem [#allocation4], %s381
        // Predicated region
        $region49: #{tpu_custom_call.1} parent=47 // pred_check
          %p383 = pneg %p66
        $region50: #{tpu_custom_call.1} parent=47 // pred_check_branch
          %385 = sbr.rel (%p383) target = $region52
        $region51: #{tpu_custom_call.1} parent=47 // pred_region
          %387 = dma.done %s379, 64
        $region52: #{tpu_custom_call.1} parent=47 // pred_fallthru
          _
        %s388 = sand.u32 %s33, 1
        %s389 = scalar_lea.sflag [#allocation8], %s388
        %s390 = sand.u32 %s81, 1
        %s391 = smul.addr %s390, 4
        %s392 = scalar_lea.vmem [#allocation7], %s391
        // Predicated region
        $region53: #{tpu_custom_call.1} parent=47 // pred_check
          %p393 = pneg %p94
        $region54: #{tpu_custom_call.1} parent=47 // pred_check_branch
          %395 = sbr.rel (%p393) target = $region56
        $region55: #{tpu_custom_call.1} parent=47 // pred_region
          %397 = dma.done %s389, 64
        $region56: #{tpu_custom_call.1} parent=47 // pred_fallthru
          _
        %s398 = sand.u32 %s33, 1
        %s399 = scalar_lea.sflag [#allocation8], %s398
        %s400 = sand.u32 %s107, 1
        %s401 = smul.addr %s400, 4
        %s402 = scalar_lea.vmem [#allocation9], %s401
        // Predicated region
        $region57: #{tpu_custom_call.1} parent=47 // pred_check
          %p403 = pneg %p120
        $region58: #{tpu_custom_call.1} parent=47 // pred_check_branch
          %405 = sbr.rel (%p403) target = $region60
        $region59: #{tpu_custom_call.1} parent=47 // pred_region
          %407 = dma.done %s399, 64
        $region60: #{tpu_custom_call.1} parent=47 // pred_fallthru
          _
        // Predicated region
        $region61: #{tpu_custom_call.1} parent=47 // pred_check
          %p408 = pneg %p141
        $region62: #{tpu_custom_call.1} parent=47 // pred_check_branch
          %410 = sbr.rel (%p408) target = $region64
        $region63: #{tpu_custom_call.1} parent=47 // pred_region
          %412 = dma.done [#allocation11], 768
        $region64: #{tpu_custom_call.1} parent=47 // pred_fallthru
          _
        // Predicated region
        $region65: #{tpu_custom_call.1} parent=47 // pred_check
          %p413 = pneg %p183
        $region66: #{tpu_custom_call.1} parent=47 // pred_check_branch
          %415 = sbr.rel (%p413) target = $region68
        $region67: #{tpu_custom_call.1} parent=47 // pred_region
          %417 = dma.done [#allocation11], 256
        $region68: #{tpu_custom_call.1} parent=47 // pred_fallthru
          _
        %s418 = sand.u32 %s53, 1
        %s419 = scalar_lea.sflag [#allocation5], %s418
        %s420 = sand.u32 %s53, 1
        %s421 = smul.addr %s420, 4
        %s422 = scalar_lea.vmem [#allocation4], %s421
        %p423 = pneg %p66
        %p424 = pneg %p63
        %s425 = sand.u32 %s33, 1
        %s426 = scalar_lea.sflag [#allocation8], %s425
        %s427 = sand.u32 %s81, 1
        %s428 = smul.addr %s427, 4
        %s429 = scalar_lea.vmem [#allocation7], %s428
        %p430 = pneg %p94
        %p431 = pneg %p91
        %s432 = sand.u32 %s33, 1
        %s433 = scalar_lea.sflag [#allocation8], %s432
        %s434 = sand.u32 %s107, 1
        %s435 = smul.addr %s434, 4
        %s436 = scalar_lea.vmem [#allocation9], %s435
        %p437 = pneg %p120
        %p438 = pneg %p117
        %p439 = pneg %p141
        %p440 = pneg %p138
        %p441 = pneg %p162
        %p442 = pneg %p159
        %p443 = pneg %p183
        %p444 = pneg %p180
        %p445 = pneg %p204
        %p446 = pneg %p201
        %p447 = pneg %p232
        %p448 = pneg %p229
        %s449 = sand.u32 %s219, 1
        %s450 = scalar_lea.sflag [#allocation6], %s449
        %s451 = sand.u32 %s219, 1
        %s452 = smul.addr %s451, 8
        %s453 = scalar_lea.vmem [#allocation13], %s452
        %p454 = pneg %p260
        %p455 = pneg %p257
        %s456 = sand.u32 %s247, 1
        %s457 = scalar_lea.sflag [#allocation15], %s456
        %s458 = sand.u32 %s247, 1
        %s459 = smul.addr %s458, 16
        %s460 = scalar_lea.vmem [#allocation14], %s459
        %p462 = scmp.eq.s32.totalorder %s38, 0
        // Predicated region
        $region69: #{tpu_custom_call.1} parent=47 // pred_check
          %p463 = pneg %p462
        $region70: #{tpu_custom_call.1} parent=47 // pred_check_branch
          %465 = sbr.rel (%p463) target = $region72
        $region71: #{tpu_custom_call.1} parent=47 // pred_region
          %v466 = vld [vmem:[%s382] sm:$0xf]
          %v467 = vld [vmem:[#allocation10] sm:$0xf]
          %v468 = vld [vmem:[#allocation10 + $0x4] sm:$0xf]
          %v469 = vld [vmem:[#allocation10 + $0x8] sm:$0xf]
          %v470 = vld [vmem:[#allocation10 + $0xc] sm:$0xf]
          %v471 = vld [vmem:[%s4] sm:$0x1]
          %v473 = vperm.slane %v471, 0
          %v479 = vunpack.c.l.b16 %v467
          %v480 = vunpack.c.l.b16 %v468
          %v481 = vunpack.c.l.b16 %v469
          %v482 = vunpack.c.l.b16 %v470
          %v483 = vpack.c.b16 %v480, %v479
          %v484 = vpack.c.b16 %v482, %v481
          %vm487 = vcmask 261120
          %v489 = vsel %vm487, %v466, 0
          %491 = vmatpush.bf16.msra.mxu0 0
          %492 = vmatpush.bf16.msra.mxu0 0
          %493 = vmatpush.bf16.msra.mxu0 0
          %494 = vmatpush.bf16.msra.mxu0 0
          %495 = vmatpush.bf16.msra.mxu0 0
          %496 = vmatpush.bf16.msra.mxu0 0
          %497 = vmatpush.bf16.msra.mxu0 %v484
          %498 = vmatpush.bf16.msra.mxu0 %v483
          %499 = vmatmul.bf16.gmra.mxu0 %v489
          %v500 = vpop.f32.mrf.mxu0
          %v501 = vadd.f32 %v473, %v500
          %v502 = vpop.f32.mrf.mxu0
          %503 = vdwg.mxu0
          %v504 = vld [vmem:[%s402] sm:$0xf]
          %s505 = scalar_lea.vmem [#allocation10], 32
          %v506 = vld [vmem:[%s505] sm:$0xf]
          %v507 = vld [vmem:[%s505 + $0x4] sm:$0xf]
          %v508 = vld [vmem:[%s505 + $0x8] sm:$0xf]
          %v509 = vld [vmem:[%s505 + $0xc] sm:$0xf]
          %s510 = scalar_lea.vmem %s4, 2
          %v511 = vld [vmem:[%s510] sm:$0x1]
          %v513 = vperm.slane %v511, 0
          %v519 = vunpack.c.l.b16 %v506
          %v520 = vunpack.c.l.b16 %v507
          %v521 = vunpack.c.l.b16 %v508
          %v522 = vunpack.c.l.b16 %v509
          %v523 = vpack.c.b16 %v520, %v519
          %v524 = vpack.c.b16 %v522, %v521
          %v528 = vsel %vm487, %v504, 0
          %530 = vmatpush.bf16.msra.mxu0 0
          %531 = vmatpush.bf16.msra.mxu0 0
          %532 = vmatpush.bf16.msra.mxu0 0
          %533 = vmatpush.bf16.msra.mxu0 0
          %534 = vmatpush.bf16.msra.mxu0 0
          %535 = vmatpush.bf16.msra.mxu0 0
          %536 = vmatpush.bf16.msra.mxu0 %v524
          %537 = vmatpush.bf16.msra.mxu0 %v523
          %538 = vmatmul.bf16.gmra.mxu0 %v528
          %v539 = vpop.f32.mrf.mxu0
          %v540 = vadd.f32 %v513, %v539
          %v541 = vpop.f32.mrf.mxu0
          %542 = vdwg.mxu0
          %v543 = vpack.c.bf16 %v501, %v501
          %v544 = vpack.c.bf16 %v540, %v540
          %vm545 = vcmask 60416
          %546 = vst.msk [vmem:[#allocation2] sm:$0xf] %vm545, %v543
          %547 = vst.msk [vmem:[#allocation3] sm:$0xf] %vm545, %v544
          %549 = vrot.lane.b32.xlu0 %v543, 120
          %v550 = vpop.permute.xlu0 %549
          %s552 = scalar_lea.vmem [#allocation2], 4
          %553 = vst.msk [vmem:[%s552] sm:$0xf] %vm545, %v550
          %555 = vrot.lane.b32.xlu0 %v544, 120
          %v556 = vpop.permute.xlu0 %555
          %s558 = scalar_lea.vmem [#allocation3], 4
          %559 = vst.msk [vmem:[%s558] sm:$0xf] %vm545, %v556
          %560 = vrot.lane.b32.xlu0 %v543, 112
          %v561 = vpop.permute.xlu0 %560
          %s563 = scalar_lea.vmem [#allocation2], 8
          %564 = vst.msk [vmem:[%s563] sm:$0xf] %vm545, %v561
          %565 = vrot.lane.b32.xlu0 %v544, 112
          %v566 = vpop.permute.xlu0 %565
          %s568 = scalar_lea.vmem [#allocation3], 8
          %569 = vst.msk [vmem:[%s568] sm:$0xf] %vm545, %v566
          %570 = vrot.lane.b32.xlu0 %v543, 104
          %v571 = vpop.permute.xlu0 %570
          %s573 = scalar_lea.vmem [#allocation2], 12
          %574 = vst.msk [vmem:[%s573] sm:$0xf] %vm545, %v571
          %575 = vrot.lane.b32.xlu0 %v544, 104
          %v576 = vpop.permute.xlu0 %575
          %s578 = scalar_lea.vmem [#allocation3], 12
          %579 = vst.msk [vmem:[%s578] sm:$0xf] %vm545, %v576
        $region72: #{tpu_custom_call.1} parent=47 // pred_fallthru
          _
        %v580 = vld [vmem:[%s392] sm:$0xf]
        %s581 = scalar_lea.vmem [#allocation10], 16
        %v582 = vld [vmem:[%s581] sm:$0xf]
        %v583 = vld [vmem:[%s581 + $0x4] sm:$0xf]
        %v584 = vld [vmem:[%s581 + $0x8] sm:$0xf]
        %v585 = vld [vmem:[%s581 + $0xc] sm:$0xf]
        %s586 = scalar_lea.vmem %s4, 1
        %v587 = vld [vmem:[%s586] sm:$0x1]
        %v589 = vperm.slane %v587, 0
        %v595 = vunpack.c.l.b16 %v582
        %v596 = vunpack.c.l.b16 %v583
        %v597 = vunpack.c.l.b16 %v584
        %v598 = vunpack.c.l.b16 %v585
        %v599 = vpack.c.b16 %v596, %v595
        %v600 = vpack.c.b16 %v598, %v597
        %vm603 = vcmask 261120
        %v605 = vsel %vm603, %v580, 0
        %607 = vmatpush.bf16.msra.mxu0 0
        %608 = vmatpush.bf16.msra.mxu0 0
        %609 = vmatpush.bf16.msra.mxu0 0
        %610 = vmatpush.bf16.msra.mxu0 0
        %611 = vmatpush.bf16.msra.mxu0 0
        %612 = vmatpush.bf16.msra.mxu0 0
        %613 = vmatpush.bf16.msra.mxu0 %v600
        %614 = vmatpush.bf16.msra.mxu0 %v599
        %615 = vmatmul.bf16.gmra.mxu0 %v605
        %v616 = vpop.f32.mrf.mxu0
        %v617 = vadd.f32 %v589, %v616
        %v618 = vpop.f32.mrf.mxu0
        %619 = vdwg.mxu0
        %v620 = vmul.f32 %v617, 0.35355338
        %v621 = vpack.c.bf16 %v620, %v620
        %v622 = vld [vmem:[#allocation2] sm:$0xf]
        %v623 = vld [vmem:[#allocation3] sm:$0xf]
        %vm624 = vcmask 64512
        %v626 = vsel %vm624, %v621, 0
        %v629 = vsel %vm624, %v622, 0
        %631 = vmatpush.bf16.xpose.msra.mxu0 0
        %632 = vmatpush.bf16.xpose.msra.mxu0 0
        %633 = vmatpush.bf16.xpose.msra.mxu0 0
        %634 = vmatpush.bf16.xpose.msra.mxu0 0
        %635 = vmatpush.bf16.xpose.msra.mxu0 0
        %636 = vmatpush.bf16.xpose.msra.mxu0 0
        %637 = vmatpush.bf16.xpose.msra.mxu0 0
        %638 = vmatpush.bf16.xpose.msra.mxu0 %v629
        %639 = vmatmul.bf16.gmra.mxu0 %v626
        %v640 = vpop.f32.mrf.mxu0
        %v641 = vadd.f32 0.0, %v640
        %v642 = vpop.f32.mrf.mxu0
        %643 = vdwg.mxu0
        %v644 = vsel %vm624, %v641, -inf
        %645 = vmax.xlane.f32.xlu0 %v644
        %v646 = vpop.xlane.xlu0 %645
        %v647 = vsub.f32 %v641, %v646
        %v648 = vmul.f32 %v647, 1.442695
        %v649 = vpow.pop %v648
        %v650 = vsel %vm624, %v649, 0.0
        %651 = vadd.xlane.f32.xlu0 %v650
        %v652 = vpop.xlane.xlu0 %651
        %v653 = vrcp.pop %v652
        %v654 = vmul.f32 %v649, %v653
        %v655 = vpack.c.bf16 %v654, %v654
        %vm656 = vcmask 60416
        %657 = vst.msk [vmem:[%s460] sm:$0xf] %vm656, %v655
        %v659 = vsel %vm624, %v655, 0
        %vm661 = vcmask 1043456
        %v663 = vsel %vm661, %v623, 0
        %665 = vmatpush.bf16.msra.mxu0 0
        %666 = vmatpush.bf16.msra.mxu0 0
        %667 = vmatpush.bf16.msra.mxu0 0
        %668 = vmatpush.bf16.msra.mxu0 0
        %669 = vmatpush.bf16.msra.mxu0 0
        %670 = vmatpush.bf16.msra.mxu0 0
        %671 = vmatpush.bf16.msra.mxu0 0
        %672 = vmatpush.bf16.msra.mxu0 %v663
        %673 = vmatmul.bf16.gmra.mxu0 %v659
        %v674 = vpop.f32.mrf.mxu0
        %v675 = vadd.f32 0.0, %v674
        %v676 = vpop.f32.mrf.mxu0
        %677 = vdwg.mxu0
        %v678 = vpack.c.bf16 %v675, %v675
        %s679 = scalar_lea.vmem [#allocation2], 4
        %v680 = vld [vmem:[%s679] sm:$0xf]
        %s681 = scalar_lea.vmem [#allocation3], 4
        %v682 = vld [vmem:[%s681] sm:$0xf]
        %v684 = vunpack.c.l.b16 %v621
        %v685 = vpack.c.b16 %v684, %v684
        %686 = vrot.lane.b32.xlu0 %v685, 120
        %v687 = vpop.permute.xlu0 %686
        %v689 = vsel %vm624, %v687, 0
        %v692 = vsel %vm624, %v680, 0
        %694 = vmatpush.bf16.xpose.msra.mxu0 0
        %695 = vmatpush.bf16.xpose.msra.mxu0 0
        %696 = vmatpush.bf16.xpose.msra.mxu0 0
        %697 = vmatpush.bf16.xpose.msra.mxu0 0
        %698 = vmatpush.bf16.xpose.msra.mxu0 0
        %699 = vmatpush.bf16.xpose.msra.mxu0 0
        %700 = vmatpush.bf16.xpose.msra.mxu0 0
        %701 = vmatpush.bf16.xpose.msra.mxu0 %v692
        %702 = vmatmul.bf16.gmra.mxu0 %v689
        %v703 = vpop.f32.mrf.mxu0
        %v704 = vadd.f32 0.0, %v703
        %v705 = vpop.f32.mrf.mxu0
        %706 = vdwg.mxu0
        %v707 = vsel %vm624, %v704, -inf
        %708 = vmax.xlane.f32.xlu0 %v707
        %v709 = vpop.xlane.xlu0 %708
        %v710 = vsub.f32 %v704, %v709
        %v711 = vmul.f32 %v710, 1.442695
        %v712 = vpow.pop %v711
        %v713 = vsel %vm624, %v712, 0.0
        %714 = vadd.xlane.f32.xlu0 %v713
        %v715 = vpop.xlane.xlu0 %714
        %v716 = vrcp.pop %v715
        %v717 = vmul.f32 %v712, %v716
        %v718 = vpack.c.bf16 %v717, %v717
        %s719 = scalar_lea.vmem %s460, 4 [#allocation14]
        %720 = vst.msk [vmem:[%s719] sm:$0xf] %vm656, %v718
        %v722 = vsel %vm624, %v718, 0
        %v725 = vsel %vm661, %v682, 0
        %727 = vmatpush.bf16.msra.mxu0 0
        %728 = vmatpush.bf16.msra.mxu0 0
        %729 = vmatpush.bf16.msra.mxu0 0
        %730 = vmatpush.bf16.msra.mxu0 0
        %731 = vmatpush.bf16.msra.mxu0 0
        %732 = vmatpush.bf16.msra.mxu0 0
        %733 = vmatpush.bf16.msra.mxu0 0
        %734 = vmatpush.bf16.msra.mxu0 %v725
        %735 = vmatmul.bf16.gmra.mxu0 %v722
        %v736 = vpop.f32.mrf.mxu0
        %v737 = vadd.f32 0.0, %v736
        %v738 = vpop.f32.mrf.mxu0
        %739 = vdwg.mxu0
        %v740 = vpack.c.bf16 %v737, %v737
        %s741 = scalar_lea.vmem [#allocation2], 8
        %v742 = vld [vmem:[%s741] sm:$0xf]
        %s743 = scalar_lea.vmem [#allocation3], 8
        %v744 = vld [vmem:[%s743] sm:$0xf]
        %745 = vrot.lane.b32.xlu0 %v685, 112
        %v746 = vpop.permute.xlu0 %745
        %v748 = vsel %vm624, %v746, 0
        %v751 = vsel %vm624, %v742, 0
        %753 = vmatpush.bf16.xpose.msra.mxu0 0
        %754 = vmatpush.bf16.xpose.msra.mxu0 0
        %755 = vmatpush.bf16.xpose.msra.mxu0 0
        %756 = vmatpush.bf16.xpose.msra.mxu0 0
        %757 = vmatpush.bf16.xpose.msra.mxu0 0
        %758 = vmatpush.bf16.xpose.msra.mxu0 0
        %759 = vmatpush.bf16.xpose.msra.mxu0 0
        %760 = vmatpush.bf16.xpose.msra.mxu0 %v751
        %761 = vmatmul.bf16.gmra.mxu0 %v748
        %v762 = vpop.f32.mrf.mxu0
        %v763 = vadd.f32 0.0, %v762
        %v764 = vpop.f32.mrf.mxu0
        %765 = vdwg.mxu0
        %v766 = vsel %vm624, %v763, -inf
        %767 = vmax.xlane.f32.xlu0 %v766
        %v768 = vpop.xlane.xlu0 %767
        %v769 = vsub.f32 %v763, %v768
        %v770 = vmul.f32 %v769, 1.442695
        %v771 = vpow.pop %v770
        %v772 = vsel %vm624, %v771, 0.0
        %773 = vadd.xlane.f32.xlu0 %v772
        %v774 = vpop.xlane.xlu0 %773
        %v775 = vrcp.pop %v774
        %v776 = vmul.f32 %v771, %v775
        %v777 = vpack.c.bf16 %v776, %v776
        %s778 = scalar_lea.vmem %s460, 8 [#allocation14]
        %779 = vst.msk [vmem:[%s778] sm:$0xf] %vm656, %v777
        %v781 = vsel %vm624, %v777, 0
        %v784 = vsel %vm661, %v744, 0
        %786 = vmatpush.bf16.msra.mxu0 0
        %787 = vmatpush.bf16.msra.mxu0 0
        %788 = vmatpush.bf16.msra.mxu0 0
        %789 = vmatpush.bf16.msra.mxu0 0
        %790 = vmatpush.bf16.msra.mxu0 0
        %791 = vmatpush.bf16.msra.mxu0 0
        %792 = vmatpush.bf16.msra.mxu0 0
        %793 = vmatpush.bf16.msra.mxu0 %v784
        %794 = vmatmul.bf16.gmra.mxu0 %v781
        %v795 = vpop.f32.mrf.mxu0
        %v796 = vadd.f32 0.0, %v795
        %v797 = vpop.f32.mrf.mxu0
        %798 = vdwg.mxu0
        %v799 = vpack.c.bf16 %v796, %v796
        %s800 = scalar_lea.vmem [#allocation2], 12
        %v801 = vld [vmem:[%s800] sm:$0xf]
        %s802 = scalar_lea.vmem [#allocation3], 12
        %v803 = vld [vmem:[%s802] sm:$0xf]
        %804 = vrot.lane.b32.xlu0 %v685, 104
        %v805 = vpop.permute.xlu0 %804
        %v807 = vsel %vm624, %v805, 0
        %v810 = vsel %vm624, %v801, 0
        %812 = vmatpush.bf16.xpose.msra.mxu0 0
        %813 = vmatpush.bf16.xpose.msra.mxu0 0
        %814 = vmatpush.bf16.xpose.msra.mxu0 0
        %815 = vmatpush.bf16.xpose.msra.mxu0 0
        %816 = vmatpush.bf16.xpose.msra.mxu0 0
        %817 = vmatpush.bf16.xpose.msra.mxu0 0
        %818 = vmatpush.bf16.xpose.msra.mxu0 0
        %819 = vmatpush.bf16.xpose.msra.mxu0 %v810
        %820 = vmatmul.bf16.gmra.mxu0 %v807
        %v821 = vpop.f32.mrf.mxu0
        %v822 = vadd.f32 0.0, %v821
        %v823 = vpop.f32.mrf.mxu0
        %824 = vdwg.mxu0
        %v825 = vsel %vm624, %v822, -inf
        %826 = vmax.xlane.f32.xlu0 %v825
        %v827 = vpop.xlane.xlu0 %826
        %v828 = vsub.f32 %v822, %v827
        %v829 = vmul.f32 %v828, 1.442695
        %v830 = vpow.pop %v829
        %v831 = vsel %vm624, %v830, 0.0
        %832 = vadd.xlane.f32.xlu0 %v831
        %v833 = vpop.xlane.xlu0 %832
        %v834 = vrcp.pop %v833
        %v835 = vmul.f32 %v830, %v834
        %v836 = vpack.c.bf16 %v835, %v835
        %s837 = scalar_lea.vmem %s460, 12 [#allocation14]
        %838 = vst.msk [vmem:[%s837] sm:$0xf] %vm656, %v836
        %v840 = vsel %vm624, %v836, 0
        %v843 = vsel %vm661, %v803, 0
        %845 = vmatpush.bf16.msra.mxu0 0
        %846 = vmatpush.bf16.msra.mxu0 0
        %847 = vmatpush.bf16.msra.mxu0 0
        %848 = vmatpush.bf16.msra.mxu0 0
        %849 = vmatpush.bf16.msra.mxu0 0
        %850 = vmatpush.bf16.msra.mxu0 0
        %851 = vmatpush.bf16.msra.mxu0 0
        %852 = vmatpush.bf16.msra.mxu0 %v843
        %853 = vmatmul.bf16.gmra.mxu0 %v840
        %v854 = vpop.f32.mrf.mxu0
        %v855 = vadd.f32 0.0, %v854
        %v856 = vpop.f32.mrf.mxu0
        %857 = vdwg.mxu0
        %v858 = vpack.c.bf16 %v855, %v855
        %v860 = vunpack.c.l.b16 %v740
        %v861 = vpack.c.b16 %v860, %v860
        %862 = vrot.lane.b32.xlu0 %v861, 8
        %v863 = vpop.permute.xlu0 %862
        %v865 = vunpack.c.l.b16 %v799
        %v866 = vpack.c.b16 %v865, %v865
        %867 = vrot.lane.b32.xlu0 %v866, 16
        %v868 = vpop.permute.xlu0 %867
        %v870 = vunpack.c.l.b16 %v858
        %v871 = vpack.c.b16 %v870, %v870
        %872 = vrot.lane.b32.xlu0 %v871, 24
        %v873 = vpop.permute.xlu0 %872
        %v876 = vsel %vm624, %v678, %v863
        %vm877 = vcmask 130048
        %v879 = vsel %vm877, %v876, %v868
        %vm880 = vcmask 195584
        %v882 = vsel %vm880, %v879, %v873
        %v883 = vld [vmem:[#allocation12] sm:$0xf]
        %v884 = vld [vmem:[#allocation12 + $0x4] sm:$0xf]
        %v885 = vld [vmem:[#allocation12 + $0x8] sm:$0xf]
        %v886 = vld [vmem:[#allocation12 + $0xc] sm:$0xf]
        %v887 = vld [vmem:[%s6] sm:$0x1]
        %v889 = vperm.slane %v887, 0
        %v895 = vunpack.c.l.b16 %v883
        %v896 = vunpack.c.l.b16 %v884
        %v897 = vunpack.c.l.b16 %v885
        %v898 = vunpack.c.l.b16 %v886
        %v899 = vpack.c.b16 %v896, %v895
        %v900 = vpack.c.b16 %v898, %v897
        %v903 = vsel %vm603, %v882, 0
        %905 = vmatpush.bf16.msra.mxu0 0
        %906 = vmatpush.bf16.msra.mxu0 0
        %907 = vmatpush.bf16.msra.mxu0 0
        %908 = vmatpush.bf16.msra.mxu0 0
        %909 = vmatpush.bf16.msra.mxu0 0
        %910 = vmatpush.bf16.msra.mxu0 0
        %911 = vmatpush.bf16.msra.mxu0 %v900
        %912 = vmatpush.bf16.msra.mxu0 %v899
        %913 = vmatmul.bf16.gmra.mxu0 %v903
        %v914 = vpop.f32.mrf.mxu0
        %v915 = vadd.f32 %v889, %v914
        %v916 = vpop.f32.mrf.mxu0
        %917 = vdwg.mxu0
        %918 = vst.msk [vmem:[%s453] sm:$0xff] %vm603, %v915
        %s919 = sand.u32 %s219, 1
        %s920 = scalar_lea.sflag [#allocation6], %s919
        %s921 = sand.u32 %s219, 1
        %s922 = smul.addr %s921, 8
        %s923 = scalar_lea.vmem [#allocation13], %s922
        %s924 = sand.u32 %s247, 1
        %s925 = scalar_lea.sflag [#allocation15], %s924
        %s926 = sand.u32 %s247, 1
        %s927 = smul.addr %s926, 16
        %s928 = scalar_lea.vmem [#allocation14], %s927
        // Predicated region
        $region73: #{tpu_custom_call.1} parent=47 // pred_check
          %p929 = pneg %p229
        $region74: #{tpu_custom_call.1} parent=47 // pred_check_branch
          %931 = sbr.rel (%p929) target = $region76
        $region75: #{tpu_custom_call.1} parent=47 // pred_region
          %933 = vsyncadd %s920, 0
          %s934 = sadd.s32 %s38, %s37
          %s935 = smul.addr %s934, 8
          %s936 = scalar_lea.hbm %s7, %s935
          %s938 = sshll.u32 %s923, 4
          %s939 = int_to_ptr.vmem [resolvable:$true] %s938
          %s940 = sshll.u32 %s936, 4
          %s941 = int_to_ptr.hbm [resolvable:$true] %s940
          %943 = dma.vmem_to_hbm [thread:$0]  %s939, 128, %s941, %s920
        $region76: #{tpu_custom_call.1} parent=47 // pred_fallthru
          _
        // Predicated region
        $region77: #{tpu_custom_call.1} parent=47 // pred_check
          %p944 = pneg %p257
        $region78: #{tpu_custom_call.1} parent=47 // pred_check_branch
          %946 = sbr.rel (%p944) target = $region80
        $region79: #{tpu_custom_call.1} parent=47 // pred_region
          %948 = vsyncadd %s925, 0
          %s949 = smul.addr %s37, 4
          %s950 = sadd.s32 %s38, %s949
          %s951 = smul.addr %s950, 4
          %s952 = scalar_lea.hbm %s8, %s951
          %s953 = sshll.u32 %s928, 4
          %s954 = int_to_ptr.vmem [resolvable:$true] %s953
          %s955 = sshll.u32 %s952, 4
          %s956 = int_to_ptr.hbm [resolvable:$true] %s955
          %961 = dma.vmem_to_hbm [thread:$0]  %s954, 256, %s956, %s925, 64, 64, 4
        $region80: #{tpu_custom_call.1} parent=47 // pred_fallthru
          _
      $region48: #{tpu_custom_call.1} parent=5 // pred_fallthru
        _
      %p962 = scmp.le.s32.totalorder 2, %s28
      // Predicated region
      $region81: #{tpu_custom_call.1} parent=5 // pred_check
        %p963 = pneg %p962
      $region82: #{tpu_custom_call.1} parent=5 // pred_check_branch
        %965 = sbr.rel (%p963) target = $region84
      $region83: #{tpu_custom_call.1} parent=5 // pred_region
        %s966 = ssub.s32 %s28, 2
        // Predicated region
        $region85: #{tpu_custom_call.1} parent=83 // pred_check
          %p967 = pneg %p235
        $region86: #{tpu_custom_call.1} parent=83 // pred_check_branch
          %969 = sbr.rel (%p967) target = $region88
        $region87: #{tpu_custom_call.1} parent=83 // pred_region
          %s970 = sand.u32 %s220, 1
          %s971 = scalar_lea.sflag [#allocation6], %s970
          %s972 = sand.u32 %s220, 1
          %s973 = smul.addr %s972, 8
          %s974 = scalar_lea.vmem [#allocation13], %s973
          %976 = dma.done %s971, 128
        $region88: #{tpu_custom_call.1} parent=83 // pred_fallthru
          _
        // Predicated region
        $region89: #{tpu_custom_call.1} parent=83 // pred_check
          %p977 = pneg %p263
        $region90: #{tpu_custom_call.1} parent=83 // pred_check_branch
          %979 = sbr.rel (%p977) target = $region92
        $region91: #{tpu_custom_call.1} parent=83 // pred_region
          %s980 = sand.u32 %s248, 1
          %s981 = scalar_lea.sflag [#allocation15], %s980
          %s982 = sand.u32 %s248, 1
          %s983 = smul.addr %s982, 16
          %s984 = scalar_lea.vmem [#allocation14], %s983
          %986 = dma.done %s981, 256
        $region92: #{tpu_custom_call.1} parent=83 // pred_fallthru
          _
      $region84: #{tpu_custom_call.1} parent=5 // pred_fallthru
        _
    $region6: #{tpu_custom_call.1} parent=1 // loop_footer
      %s32 = sadd.s32 1, %s28
    $region7: #{tpu_custom_call.1} parent=1 // loop_footer_branch
      %27 = sbr.rel target = $region3
    $region8: #{tpu_custom_call.1} parent=1 // loop_exit
      _
    %987 = vsyncpa [#allocation5], 1
    %s988 = scalar_lea.sflag [#allocation5], 1
    %989 = vsyncpa %s988, 1
    %990 = vsyncpa [#allocation8], 1
    %s991 = scalar_lea.sflag [#allocation8], 1
    %992 = vsyncpa %s991, 1
    %993 = vsyncpa [#allocation11], 1
    %994 = vsyncpa [#allocation6], 1
    %s995 = scalar_lea.sflag [#allocation6], 1
    %996 = vsyncpa %s995, 1
    %997 = vsyncpa [#allocation15], 1
    %s998 = scalar_lea.sflag [#allocation15], 1
    %999 = vsyncpa %s998, 1

</llo_original>
